<compile_context>
chip_gen: v7x
topology: tpu7x:2x2x1
jax: 0.10.0
libtpu: 0.0.40
codegen_flags: <defaults>
</compile_context>

<pallas_src>
import functools

import numpy as np
import jax
import jax.numpy as jnp
from jax.experimental import pallas as pl
from jax.experimental.pallas import tpu as pltpu


# ----------------------------------------------------------------------------
# Pallas kernel: fused chain of 3x3 conv (+bias, +ReLU) nodes, one batch elem.
# ----------------------------------------------------------------------------
def _fused_chain_kernel(*refs, width, n_layers):
    """refs = (x_ref, mask_ref, w_0, b_0, ..., w_{L-1}, b_{L-1}, o_ref)

    x_ref    : (1, Cin, H*W)      channels on sublanes, pixels on lanes
    mask_ref : (9, 1, H*W)        per-tap border validity masks (0/1 f32)
    w_i      : (9, Cout_i, Cin_i) per-tap weight matrices
    b_i      : (Cout_i, 1)
    o_ref    : (1, Cout_last, H*W)
    """
    x_ref, mask_ref = refs[0], refs[1]
    o_ref = refs[-1]
    param_refs = refs[2:-1]
    assert len(param_refs) == 2 * n_layers

    h = x_ref[0].astype(jnp.float32)               # (Cin, HW)

    for li in range(n_layers):
        w_ref = param_refs[2 * li]                 # (9, Cout, Cin)
        b_ref = param_refs[2 * li + 1]             # (Cout, 1)
        acc = None
        for kh in range(3):
            for kw in range(3):
                t = kh * 3 + kw
                # output pixel p needs input pixel p + shift (cross-correlation)
                shift = (kh - 1) * width + (kw - 1)
                shifted = jnp.roll(h, -shift, axis=1) if shift != 0 else h
                tap = shifted * mask_ref[t]        # zero the out-of-image taps
                contrib = jnp.dot(w_ref[t], tap,
                                  preferred_element_type=jnp.float32)
                acc = contrib if acc is None else acc + contrib
        h = jnp.maximum(acc + b_ref[...], 0.0)     # bias + ReLU, (Cout, HW)

    o_ref[0] = h.astype(o_ref.dtype)


def _make_border_masks(H, W):
    """(9, 1, H*W) f32 masks: 1 where the shifted tap stays inside the image."""
    masks = np.zeros((9, 1, H * W), np.float32)
    hh, ww = np.meshgrid(np.arange(H), np.arange(W), indexing="ij")
    hh, ww = hh.reshape(-1), ww.reshape(-1)
    for kh in range(3):
        for kw in range(3):
            dh, dw = kh - 1, kw - 1
            valid = ((hh + dh >= 0) & (hh + dh < H) &
                     (ww + dw >= 0) & (ww + dw < W))
            masks[kh * 3 + kw, 0, :] = valid.astype(np.float32)
    return jnp.asarray(masks)


def fused_flow_forward(x_nchw, kernel_params):
    """Run the whole chain in a single pallas_call.

    x_nchw        : (N, Cin, H, W) float32
    kernel_params : list of (w_k (9, Cout, Cin), b_k (Cout, 1)) in chain order
    returns       : (N, Cout_last, H, W) float32
    """
    N, Cin, H, W = x_nchw.shape
    HW = H * W
    n_layers = len(kernel_params)
    cout_last = kernel_params[-1][0].shape[1]

    masks = _make_border_masks(H, W)
    x_flat = x_nchw.reshape(N, Cin, HW)            # free: NCHW is contiguous

    in_specs = [
        pl.BlockSpec((1, Cin, HW), lambda n: (n, 0, 0)),   # per-batch input
        pl.BlockSpec((9, 1, HW), lambda n: (0, 0, 0)),     # resident masks
    ]
    args = [x_flat, masks]
    for (w_k, b_k) in kernel_params:
        _, co, ci = w_k.shape
        in_specs.append(pl.BlockSpec((9, co, ci), lambda n: (0, 0, 0)))
        in_specs.append(pl.BlockSpec((co, 1), lambda n: (0, 0)))
        args += [w_k, b_k]

    kernel = functools.partial(_fused_chain_kernel, width=W, n_layers=n_layers)
    out = pl.pallas_call(
        kernel,
        out_shape=jax.ShapeDtypeStruct((N, cout_last, HW), x_nchw.dtype),
        grid_spec=pltpu.PrefetchScalarGridSpec(
            num_scalar_prefetch=0,
            grid=(N,),
            in_specs=in_specs,
            out_specs=pl.BlockSpec((1, cout_last, HW), lambda n: (n, 0, 0)),
        ),
        compiler_params=pltpu.CompilerParams(
            dimension_semantics=("parallel",)),
    )(*args)
    return out.reshape(N, cout_last, H, W)


# ----------------------------------------------------------------------------
# Flow / Chain machinery (mirrors ModuleFlow's structure, config built in-script)
# ----------------------------------------------------------------------------
CONFIG = {
    "chain": ["conv1", "conv2"],
    "nodes": {
        "conv1": {"type": "conv3x3_relu", "in_ch": 4, "out_ch": 8},
        "conv2": {"type": "conv3x3_relu", "in_ch": 8, "out_ch": 4},
    },
}


class Chain:
    """Sequential execution order of node names."""

    def __init__(self, order):
        self.order = list(order)

    def __iter__(self):
        return iter(self.order)


class Flow:
    """Runs the chain of nodes over the input (NCHW in / NCHW out)."""

    def __init__(self, config, chain_cls):
        self.config = config
        self.chain = chain_cls(config["chain"])
        self.node_cfgs = config["nodes"]

    def __call__(self, x_nchw, nodes):
        kernel_params = [nodes[name]["kernel"] for name in self.chain]
        return fused_flow_forward(x_nchw, kernel_params)


class ModuleFlow:
    """JAX/Pallas analogue of the PyTorch ModuleFlow."""

    def __init__(self, config):
        self.flow = Flow(config, Chain)
        self.sub_modules = self._init_nodes(config)
        self._forward = jax.jit(lambda x: self.flow(x, nodes=self.sub_modules))

    @staticmethod
    def _init_nodes(config):
        # Deterministic parameter init (kaiming-ish scaling), no checkpoint load.
        # Kernel-layout params are prepared ONCE here (hoisted off the hot path).
        nodes = {}
        key = jax.random.PRNGKey(42)
        for name in config["chain"]:
            cfg = config["nodes"][name]
            cin, cout = cfg["in_ch"], cfg["out_ch"]
            key, k_w, k_b = jax.random.split(key, 3)
            fan_in = cin * 3 * 3
            w = jax.random.normal(k_w, (cout, cin, 3, 3), jnp.float32)
            w = w * (2.0 / fan_in) ** 0.5
            b = 0.01 * jax.random.normal(k_b, (cout,), jnp.float32)
            # (Cout, Cin, kh, kw) -> per-tap matrices (9, Cout, Cin), tap = kh*3+kw
            w_k = jnp.transpose(w, (2, 3, 0, 1)).reshape(9, cout, cin)
            b_k = b.reshape(cout, 1)
            nodes[name] = {"torch_layout": (w, b), "kernel": (w_k, b_k)}
        return nodes

    def __call__(self, x, **kwargs):
        return self._forward(x)


# ----------------------------------------------------------------------------
# Reference check (plain JAX conv) + main
# ----------------------------------------------------------------------------
def _reference_forward(module, x_nchw):
    h = x_nchw
    for name in module.flow.chain:
        w, b = module.sub_modules[name]["torch_layout"]
        h = jax.lax.conv_general_dilated(
            h, w, window_strides=(1, 1), padding="SAME",
            dimension_numbers=("NCHW", "OIHW", "NCHW"),
            precision=jax.lax.Precision.HIGHEST)
        h = jax.nn.relu(h + b[None, :, None, None])
    return h


if __name__ == "__main__":
    key = jax.random.PRNGKey(0)
    x = jax.random.normal(key, (2, 4, 16, 16), jnp.float32)  # NCHW

    module = ModuleFlow(CONFIG)
    out = module(x)
    out = jax.block_until_ready(out)

    ref = _reference_forward(module, x)
    assert out.shape == (2, 4, 16, 16), out.shape
    max_err = float(jnp.max(jnp.abs(out - ref)))
    assert jnp.allclose(out, ref, atol=1e-3, rtol=1e-3), max_err

    print("KERNEL_OK")
</pallas_src>

<mosaic_0001>
module attributes {stable_mosaic.version = 11 : i64} {
  func.func @_fused_chain_kernel(%arg0: i32, %arg1: memref<1x4x256xf32, #tpu.memory_space<vmem>>, %arg2: memref<9x1x256xf32, #tpu.memory_space<vmem>>, %arg3: memref<9x8x4xf32, #tpu.memory_space<vmem>>, %arg4: memref<8x1xf32, #tpu.memory_space<vmem>>, %arg5: memref<9x4x8xf32, #tpu.memory_space<vmem>>, %arg6: memref<4x1xf32, #tpu.memory_space<vmem>>, %arg7: memref<1x4x256xf32, #tpu.memory_space<vmem>>) attributes {dimension_semantics = [#tpu.dimension_semantics<parallel>], iteration_bounds = array<i64: 2>, scalar_prefetch = 0 : i64, scratch_operands = 0 : i64, tpu.core_type = #tpu.core_type<tc>, window_params = [{transform_indices = @transform_0, window_bounds = array<i64: 1, 4, 256>}, {pipeline_mode = #tpu.pipeline_mode<synchronous>, transform_indices = @transform_1, window_bounds = array<i64: 9, 1, 256>}, {pipeline_mode = #tpu.pipeline_mode<synchronous>, transform_indices = @transform_2, window_bounds = array<i64: 9, 8, 4>}, {pipeline_mode = #tpu.pipeline_mode<synchronous>, transform_indices = @transform_3, window_bounds = array<i64: 8, 1>}, {pipeline_mode = #tpu.pipeline_mode<synchronous>, transform_indices = @transform_4, window_bounds = array<i64: 9, 4, 8>}, {pipeline_mode = #tpu.pipeline_mode<synchronous>, transform_indices = @transform_5, window_bounds = array<i64: 4, 1>}, {transform_indices = @transform_6, window_bounds = array<i64: 1, 4, 256>}]} {
    %c0 = arith.constant 0 : index
    %c0_0 = arith.constant 0 : index
    %c0_1 = arith.constant 0 : index
    %0 = vector.load %arg1[%c0, %c0_0, %c0_1] : memref<1x4x256xf32, #tpu.memory_space<vmem>>, vector<1x4x256xf32>
    %1 = vector.shape_cast %0 : vector<1x4x256xf32> to vector<4x256xf32>
    %2 = vector.extract_strided_slice %1 {offsets = [0, 239], sizes = [4, 17], strides = [1, 1]} : vector<4x256xf32> to vector<4x17xf32>
    %3 = vector.extract_strided_slice %1 {offsets = [0, 0], sizes = [4, 239], strides = [1, 1]} : vector<4x256xf32> to vector<4x239xf32>
    %4 = tpu.concatenate %2, %3 in 1 : vector<4x17xf32>, vector<4x239xf32> -> vector<4x256xf32>
    %c0_2 = arith.constant 0 : index
    %c0_3 = arith.constant 0 : index
    %c0_4 = arith.constant 0 : index
    %5 = vector.load %arg2[%c0_2, %c0_3, %c0_4] : memref<9x1x256xf32, #tpu.memory_space<vmem>>, vector<1x1x256xf32>
    %6 = vector.shape_cast %5 : vector<1x1x256xf32> to vector<1x256xf32>
    %7 = vector.broadcast %6 : vector<1x256xf32> to vector<4x256xf32>
    %8 = arith.mulf %4, %7 : vector<4x256xf32>
    %c0_5 = arith.constant 0 : index
    %c0_6 = arith.constant 0 : index
    %c0_7 = arith.constant 0 : index
    %9 = vector.load %arg3[%c0_5, %c0_6, %c0_7] : memref<9x8x4xf32, #tpu.memory_space<vmem>>, vector<1x8x4xf32>
    %10 = vector.shape_cast %9 : vector<1x8x4xf32> to vector<8x4xf32>
    %cst = arith.constant dense<0.000000e+00> : vector<8x256xf32>
    %11 = tpu.matmul %10, %8, %cst {dimension_numbers = #tpu.dot_dimension_numbers<[1], [0], [0], [1], [0, 0, 1, 1], [], []>} : vector<8x4xf32>, vector<4x256xf32>, vector<8x256xf32> -> vector<8x256xf32>
    %12 = vector.extract_strided_slice %1 {offsets = [0, 240], sizes = [4, 16], strides = [1, 1]} : vector<4x256xf32> to vector<4x16xf32>
    %13 = vector.extract_strided_slice %1 {offsets = [0, 0], sizes = [4, 240], strides = [1, 1]} : vector<4x256xf32> to vector<4x240xf32>
    %14 = tpu.concatenate %12, %13 in 1 : vector<4x16xf32>, vector<4x240xf32> -> vector<4x256xf32>
    %c1 = arith.constant 1 : index
    %c0_8 = arith.constant 0 : index
    %c0_9 = arith.constant 0 : index
    %15 = vector.load %arg2[%c1, %c0_8, %c0_9] : memref<9x1x256xf32, #tpu.memory_space<vmem>>, vector<1x1x256xf32>
    %16 = vector.shape_cast %15 : vector<1x1x256xf32> to vector<1x256xf32>
    %17 = vector.broadcast %16 : vector<1x256xf32> to vector<4x256xf32>
    %18 = arith.mulf %14, %17 : vector<4x256xf32>
    %c1_10 = arith.constant 1 : index
    %c0_11 = arith.constant 0 : index
    %c0_12 = arith.constant 0 : index
    %19 = vector.load %arg3[%c1_10, %c0_11, %c0_12] : memref<9x8x4xf32, #tpu.memory_space<vmem>>, vector<1x8x4xf32>
    %20 = vector.shape_cast %19 : vector<1x8x4xf32> to vector<8x4xf32>
    %cst_13 = arith.constant dense<0.000000e+00> : vector<8x256xf32>
    %21 = tpu.matmul %20, %18, %cst_13 {dimension_numbers = #tpu.dot_dimension_numbers<[1], [0], [0], [1], [0, 0, 1, 1], [], []>} : vector<8x4xf32>, vector<4x256xf32>, vector<8x256xf32> -> vector<8x256xf32>
    %22 = arith.addf %11, %21 : vector<8x256xf32>
    %23 = vector.extract_strided_slice %1 {offsets = [0, 241], sizes = [4, 15], strides = [1, 1]} : vector<4x256xf32> to vector<4x15xf32>
    %24 = vector.extract_strided_slice %1 {offsets = [0, 0], sizes = [4, 241], strides = [1, 1]} : vector<4x256xf32> to vector<4x241xf32>
    %25 = tpu.concatenate %23, %24 in 1 : vector<4x15xf32>, vector<4x241xf32> -> vector<4x256xf32>
    %c2 = arith.constant 2 : index
    %c0_14 = arith.constant 0 : index
    %c0_15 = arith.constant 0 : index
    %26 = vector.load %arg2[%c2, %c0_14, %c0_15] : memref<9x1x256xf32, #tpu.memory_space<vmem>>, vector<1x1x256xf32>
    %27 = vector.shape_cast %26 : vector<1x1x256xf32> to vector<1x256xf32>
    %28 = vector.broadcast %27 : vector<1x256xf32> to vector<4x256xf32>
    %29 = arith.mulf %25, %28 : vector<4x256xf32>
    %c2_16 = arith.constant 2 : index
    %c0_17 = arith.constant 0 : index
    %c0_18 = arith.constant 0 : index
    %30 = vector.load %arg3[%c2_16, %c0_17, %c0_18] : memref<9x8x4xf32, #tpu.memory_space<vmem>>, vector<1x8x4xf32>
    %31 = vector.shape_cast %30 : vector<1x8x4xf32> to vector<8x4xf32>
    %cst_19 = arith.constant dense<0.000000e+00> : vector<8x256xf32>
    %32 = tpu.matmul %31, %29, %cst_19 {dimension_numbers = #tpu.dot_dimension_numbers<[1], [0], [0], [1], [0, 0, 1, 1], [], []>} : vector<8x4xf32>, vector<4x256xf32>, vector<8x256xf32> -> vector<8x256xf32>
    %33 = arith.addf %22, %32 : vector<8x256xf32>
    %34 = vector.extract_strided_slice %1 {offsets = [0, 255], sizes = [4, 1], strides = [1, 1]} : vector<4x256xf32> to vector<4x1xf32>
    %35 = vector.extract_strided_slice %1 {offsets = [0, 0], sizes = [4, 255], strides = [1, 1]} : vector<4x256xf32> to vector<4x255xf32>
    %36 = tpu.concatenate %34, %35 in 1 : vector<4x1xf32>, vector<4x255xf32> -> vector<4x256xf32>
    %c3 = arith.constant 3 : index
    %c0_20 = arith.constant 0 : index
    %c0_21 = arith.constant 0 : index
    %37 = vector.load %arg2[%c3, %c0_20, %c0_21] : memref<9x1x256xf32, #tpu.memory_space<vmem>>, vector<1x1x256xf32>
    %38 = vector.shape_cast %37 : vector<1x1x256xf32> to vector<1x256xf32>
    %39 = vector.broadcast %38 : vector<1x256xf32> to vector<4x256xf32>
    %40 = arith.mulf %36, %39 : vector<4x256xf32>
    %c3_22 = arith.constant 3 : index
    %c0_23 = arith.constant 0 : index
    %c0_24 = arith.constant 0 : index
    %41 = vector.load %arg3[%c3_22, %c0_23, %c0_24] : memref<9x8x4xf32, #tpu.memory_space<vmem>>, vector<1x8x4xf32>
    %42 = vector.shape_cast %41 : vector<1x8x4xf32> to vector<8x4xf32>
    %cst_25 = arith.constant dense<0.000000e+00> : vector<8x256xf32>
    %43 = tpu.matmul %42, %40, %cst_25 {dimension_numbers = #tpu.dot_dimension_numbers<[1], [0], [0], [1], [0, 0, 1, 1], [], []>} : vector<8x4xf32>, vector<4x256xf32>, vector<8x256xf32> -> vector<8x256xf32>
    %44 = arith.addf %33, %43 : vector<8x256xf32>
    %c4 = arith.constant 4 : index
    %c0_26 = arith.constant 0 : index
    %c0_27 = arith.constant 0 : index
    %45 = vector.load %arg2[%c4, %c0_26, %c0_27] : memref<9x1x256xf32, #tpu.memory_space<vmem>>, vector<1x1x256xf32>
    %46 = vector.shape_cast %45 : vector<1x1x256xf32> to vector<1x256xf32>
    %47 = vector.broadcast %46 : vector<1x256xf32> to vector<4x256xf32>
    %48 = arith.mulf %1, %47 : vector<4x256xf32>
    %c4_28 = arith.constant 4 : index
    %c0_29 = arith.constant 0 : index
    %c0_30 = arith.constant 0 : index
    %49 = vector.load %arg3[%c4_28, %c0_29, %c0_30] : memref<9x8x4xf32, #tpu.memory_space<vmem>>, vector<1x8x4xf32>
    %50 = vector.shape_cast %49 : vector<1x8x4xf32> to vector<8x4xf32>
    %cst_31 = arith.constant dense<0.000000e+00> : vector<8x256xf32>
    %51 = tpu.matmul %50, %48, %cst_31 {dimension_numbers = #tpu.dot_dimension_numbers<[1], [0], [0], [1], [0, 0, 1, 1], [], []>} : vector<8x4xf32>, vector<4x256xf32>, vector<8x256xf32> -> vector<8x256xf32>
    %52 = arith.addf %44, %51 : vector<8x256xf32>
    %53 = vector.extract_strided_slice %1 {offsets = [0, 1], sizes = [4, 255], strides = [1, 1]} : vector<4x256xf32> to vector<4x255xf32>
    %54 = vector.extract_strided_slice %1 {offsets = [0, 0], sizes = [4, 1], strides = [1, 1]} : vector<4x256xf32> to vector<4x1xf32>
    %55 = tpu.concatenate %53, %54 in 1 : vector<4x255xf32>, vector<4x1xf32> -> vector<4x256xf32>
    %c5 = arith.constant 5 : index
    %c0_32 = arith.constant 0 : index
    %c0_33 = arith.constant 0 : index
    %56 = vector.load %arg2[%c5, %c0_32, %c0_33] : memref<9x1x256xf32, #tpu.memory_space<vmem>>, vector<1x1x256xf32>
    %57 = vector.shape_cast %56 : vector<1x1x256xf32> to vector<1x256xf32>
    %58 = vector.broadcast %57 : vector<1x256xf32> to vector<4x256xf32>
    %59 = arith.mulf %55, %58 : vector<4x256xf32>
    %c5_34 = arith.constant 5 : index
    %c0_35 = arith.constant 0 : index
    %c0_36 = arith.constant 0 : index
    %60 = vector.load %arg3[%c5_34, %c0_35, %c0_36] : memref<9x8x4xf32, #tpu.memory_space<vmem>>, vector<1x8x4xf32>
    %61 = vector.shape_cast %60 : vector<1x8x4xf32> to vector<8x4xf32>
    %cst_37 = arith.constant dense<0.000000e+00> : vector<8x256xf32>
    %62 = tpu.matmul %61, %59, %cst_37 {dimension_numbers = #tpu.dot_dimension_numbers<[1], [0], [0], [1], [0, 0, 1, 1], [], []>} : vector<8x4xf32>, vector<4x256xf32>, vector<8x256xf32> -> vector<8x256xf32>
    %63 = arith.addf %52, %62 : vector<8x256xf32>
    %64 = vector.extract_strided_slice %1 {offsets = [0, 15], sizes = [4, 241], strides = [1, 1]} : vector<4x256xf32> to vector<4x241xf32>
    %65 = vector.extract_strided_slice %1 {offsets = [0, 0], sizes = [4, 15], strides = [1, 1]} : vector<4x256xf32> to vector<4x15xf32>
    %66 = tpu.concatenate %64, %65 in 1 : vector<4x241xf32>, vector<4x15xf32> -> vector<4x256xf32>
    %c6 = arith.constant 6 : index
    %c0_38 = arith.constant 0 : index
    %c0_39 = arith.constant 0 : index
    %67 = vector.load %arg2[%c6, %c0_38, %c0_39] : memref<9x1x256xf32, #tpu.memory_space<vmem>>, vector<1x1x256xf32>
    %68 = vector.shape_cast %67 : vector<1x1x256xf32> to vector<1x256xf32>
    %69 = vector.broadcast %68 : vector<1x256xf32> to vector<4x256xf32>
    %70 = arith.mulf %66, %69 : vector<4x256xf32>
    %c6_40 = arith.constant 6 : index
    %c0_41 = arith.constant 0 : index
    %c0_42 = arith.constant 0 : index
    %71 = vector.load %arg3[%c6_40, %c0_41, %c0_42] : memref<9x8x4xf32, #tpu.memory_space<vmem>>, vector<1x8x4xf32>
    %72 = vector.shape_cast %71 : vector<1x8x4xf32> to vector<8x4xf32>
    %cst_43 = arith.constant dense<0.000000e+00> : vector<8x256xf32>
    %73 = tpu.matmul %72, %70, %cst_43 {dimension_numbers = #tpu.dot_dimension_numbers<[1], [0], [0], [1], [0, 0, 1, 1], [], []>} : vector<8x4xf32>, vector<4x256xf32>, vector<8x256xf32> -> vector<8x256xf32>
    %74 = arith.addf %63, %73 : vector<8x256xf32>
    %75 = vector.extract_strided_slice %1 {offsets = [0, 16], sizes = [4, 240], strides = [1, 1]} : vector<4x256xf32> to vector<4x240xf32>
    %76 = vector.extract_strided_slice %1 {offsets = [0, 0], sizes = [4, 16], strides = [1, 1]} : vector<4x256xf32> to vector<4x16xf32>
    %77 = tpu.concatenate %75, %76 in 1 : vector<4x240xf32>, vector<4x16xf32> -> vector<4x256xf32>
    %c7 = arith.constant 7 : index
    %c0_44 = arith.constant 0 : index
    %c0_45 = arith.constant 0 : index
    %78 = vector.load %arg2[%c7, %c0_44, %c0_45] : memref<9x1x256xf32, #tpu.memory_space<vmem>>, vector<1x1x256xf32>
    %79 = vector.shape_cast %78 : vector<1x1x256xf32> to vector<1x256xf32>
    %80 = vector.broadcast %79 : vector<1x256xf32> to vector<4x256xf32>
    %81 = arith.mulf %77, %80 : vector<4x256xf32>
    %c7_46 = arith.constant 7 : index
    %c0_47 = arith.constant 0 : index
    %c0_48 = arith.constant 0 : index
    %82 = vector.load %arg3[%c7_46, %c0_47, %c0_48] : memref<9x8x4xf32, #tpu.memory_space<vmem>>, vector<1x8x4xf32>
    %83 = vector.shape_cast %82 : vector<1x8x4xf32> to vector<8x4xf32>
    %cst_49 = arith.constant dense<0.000000e+00> : vector<8x256xf32>
    %84 = tpu.matmul %83, %81, %cst_49 {dimension_numbers = #tpu.dot_dimension_numbers<[1], [0], [0], [1], [0, 0, 1, 1], [], []>} : vector<8x4xf32>, vector<4x256xf32>, vector<8x256xf32> -> vector<8x256xf32>
    %85 = arith.addf %74, %84 : vector<8x256xf32>
    %86 = vector.extract_strided_slice %1 {offsets = [0, 17], sizes = [4, 239], strides = [1, 1]} : vector<4x256xf32> to vector<4x239xf32>
    %87 = vector.extract_strided_slice %1 {offsets = [0, 0], sizes = [4, 17], strides = [1, 1]} : vector<4x256xf32> to vector<4x17xf32>
    %88 = tpu.concatenate %86, %87 in 1 : vector<4x239xf32>, vector<4x17xf32> -> vector<4x256xf32>
    %c8 = arith.constant 8 : index
    %c0_50 = arith.constant 0 : index
    %c0_51 = arith.constant 0 : index
    %89 = vector.load %arg2[%c8, %c0_50, %c0_51] : memref<9x1x256xf32, #tpu.memory_space<vmem>>, vector<1x1x256xf32>
    %90 = vector.shape_cast %89 : vector<1x1x256xf32> to vector<1x256xf32>
    %91 = vector.broadcast %90 : vector<1x256xf32> to vector<4x256xf32>
    %92 = arith.mulf %88, %91 : vector<4x256xf32>
    %c8_52 = arith.constant 8 : index
    %c0_53 = arith.constant 0 : index
    %c0_54 = arith.constant 0 : index
    %93 = vector.load %arg3[%c8_52, %c0_53, %c0_54] : memref<9x8x4xf32, #tpu.memory_space<vmem>>, vector<1x8x4xf32>
    %94 = vector.shape_cast %93 : vector<1x8x4xf32> to vector<8x4xf32>
    %cst_55 = arith.constant dense<0.000000e+00> : vector<8x256xf32>
    %95 = tpu.matmul %94, %92, %cst_55 {dimension_numbers = #tpu.dot_dimension_numbers<[1], [0], [0], [1], [0, 0, 1, 1], [], []>} : vector<8x4xf32>, vector<4x256xf32>, vector<8x256xf32> -> vector<8x256xf32>
    %96 = arith.addf %85, %95 : vector<8x256xf32>
    %c0_56 = arith.constant 0 : index
    %c0_57 = arith.constant 0 : index
    %97 = vector.load %arg4[%c0_56, %c0_57] : memref<8x1xf32, #tpu.memory_space<vmem>>, vector<8x1xf32>
    %98 = vector.broadcast %97 : vector<8x1xf32> to vector<8x256xf32>
    %99 = arith.addf %96, %98 : vector<8x256xf32>
    %cst_58 = arith.constant 0.000000e+00 : f32
    %100 = vector.broadcast %cst_58 : f32 to vector<8x256xf32>
    %101 = arith.maximumf %99, %100 : vector<8x256xf32>
    %102 = vector.extract_strided_slice %101 {offsets = [0, 239], sizes = [8, 17], strides = [1, 1]} : vector<8x256xf32> to vector<8x17xf32>
    %103 = vector.extract_strided_slice %101 {offsets = [0, 0], sizes = [8, 239], strides = [1, 1]} : vector<8x256xf32> to vector<8x239xf32>
    %104 = tpu.concatenate %102, %103 in 1 : vector<8x17xf32>, vector<8x239xf32> -> vector<8x256xf32>
    %c0_59 = arith.constant 0 : index
    %c0_60 = arith.constant 0 : index
    %c0_61 = arith.constant 0 : index
    %105 = vector.load %arg2[%c0_59, %c0_60, %c0_61] : memref<9x1x256xf32, #tpu.memory_space<vmem>>, vector<1x1x256xf32>
    %106 = vector.shape_cast %105 : vector<1x1x256xf32> to vector<1x256xf32>
    %107 = vector.broadcast %106 : vector<1x256xf32> to vector<8x256xf32>
    %108 = arith.mulf %104, %107 : vector<8x256xf32>
    %c0_62 = arith.constant 0 : index
    %c0_63 = arith.constant 0 : index
    %c0_64 = arith.constant 0 : index
    %109 = vector.load %arg5[%c0_62, %c0_63, %c0_64] : memref<9x4x8xf32, #tpu.memory_space<vmem>>, vector<1x4x8xf32>
    %110 = vector.shape_cast %109 : vector<1x4x8xf32> to vector<4x8xf32>
    %cst_65 = arith.constant dense<0.000000e+00> : vector<4x256xf32>
    %111 = tpu.matmul %110, %108, %cst_65 {dimension_numbers = #tpu.dot_dimension_numbers<[1], [0], [0], [1], [0, 0, 1, 1], [], []>} : vector<4x8xf32>, vector<8x256xf32>, vector<4x256xf32> -> vector<4x256xf32>
    %112 = vector.extract_strided_slice %101 {offsets = [0, 240], sizes = [8, 16], strides = [1, 1]} : vector<8x256xf32> to vector<8x16xf32>
    %113 = vector.extract_strided_slice %101 {offsets = [0, 0], sizes = [8, 240], strides = [1, 1]} : vector<8x256xf32> to vector<8x240xf32>
    %114 = tpu.concatenate %112, %113 in 1 : vector<8x16xf32>, vector<8x240xf32> -> vector<8x256xf32>
    %c1_66 = arith.constant 1 : index
    %c0_67 = arith.constant 0 : index
    %c0_68 = arith.constant 0 : index
    %115 = vector.load %arg2[%c1_66, %c0_67, %c0_68] : memref<9x1x256xf32, #tpu.memory_space<vmem>>, vector<1x1x256xf32>
    %116 = vector.shape_cast %115 : vector<1x1x256xf32> to vector<1x256xf32>
    %117 = vector.broadcast %116 : vector<1x256xf32> to vector<8x256xf32>
    %118 = arith.mulf %114, %117 : vector<8x256xf32>
    %c1_69 = arith.constant 1 : index
    %c0_70 = arith.constant 0 : index
    %c0_71 = arith.constant 0 : index
    %119 = vector.load %arg5[%c1_69, %c0_70, %c0_71] : memref<9x4x8xf32, #tpu.memory_space<vmem>>, vector<1x4x8xf32>
    %120 = vector.shape_cast %119 : vector<1x4x8xf32> to vector<4x8xf32>
    %cst_72 = arith.constant dense<0.000000e+00> : vector<4x256xf32>
    %121 = tpu.matmul %120, %118, %cst_72 {dimension_numbers = #tpu.dot_dimension_numbers<[1], [0], [0], [1], [0, 0, 1, 1], [], []>} : vector<4x8xf32>, vector<8x256xf32>, vector<4x256xf32> -> vector<4x256xf32>
    %122 = arith.addf %111, %121 : vector<4x256xf32>
    %123 = vector.extract_strided_slice %101 {offsets = [0, 241], sizes = [8, 15], strides = [1, 1]} : vector<8x256xf32> to vector<8x15xf32>
    %124 = vector.extract_strided_slice %101 {offsets = [0, 0], sizes = [8, 241], strides = [1, 1]} : vector<8x256xf32> to vector<8x241xf32>
    %125 = tpu.concatenate %123, %124 in 1 : vector<8x15xf32>, vector<8x241xf32> -> vector<8x256xf32>
    %c2_73 = arith.constant 2 : index
    %c0_74 = arith.constant 0 : index
    %c0_75 = arith.constant 0 : index
    %126 = vector.load %arg2[%c2_73, %c0_74, %c0_75] : memref<9x1x256xf32, #tpu.memory_space<vmem>>, vector<1x1x256xf32>
    %127 = vector.shape_cast %126 : vector<1x1x256xf32> to vector<1x256xf32>
    %128 = vector.broadcast %127 : vector<1x256xf32> to vector<8x256xf32>
    %129 = arith.mulf %125, %128 : vector<8x256xf32>
    %c2_76 = arith.constant 2 : index
    %c0_77 = arith.constant 0 : index
    %c0_78 = arith.constant 0 : index
    %130 = vector.load %arg5[%c2_76, %c0_77, %c0_78] : memref<9x4x8xf32, #tpu.memory_space<vmem>>, vector<1x4x8xf32>
    %131 = vector.shape_cast %130 : vector<1x4x8xf32> to vector<4x8xf32>
    %cst_79 = arith.constant dense<0.000000e+00> : vector<4x256xf32>
    %132 = tpu.matmul %131, %129, %cst_79 {dimension_numbers = #tpu.dot_dimension_numbers<[1], [0], [0], [1], [0, 0, 1, 1], [], []>} : vector<4x8xf32>, vector<8x256xf32>, vector<4x256xf32> -> vector<4x256xf32>
    %133 = arith.addf %122, %132 : vector<4x256xf32>
    %134 = vector.extract_strided_slice %101 {offsets = [0, 255], sizes = [8, 1], strides = [1, 1]} : vector<8x256xf32> to vector<8x1xf32>
    %135 = vector.extract_strided_slice %101 {offsets = [0, 0], sizes = [8, 255], strides = [1, 1]} : vector<8x256xf32> to vector<8x255xf32>
    %136 = tpu.concatenate %134, %135 in 1 : vector<8x1xf32>, vector<8x255xf32> -> vector<8x256xf32>
    %c3_80 = arith.constant 3 : index
    %c0_81 = arith.constant 0 : index
    %c0_82 = arith.constant 0 : index
    %137 = vector.load %arg2[%c3_80, %c0_81, %c0_82] : memref<9x1x256xf32, #tpu.memory_space<vmem>>, vector<1x1x256xf32>
    %138 = vector.shape_cast %137 : vector<1x1x256xf32> to vector<1x256xf32>
    %139 = vector.broadcast %138 : vector<1x256xf32> to vector<8x256xf32>
    %140 = arith.mulf %136, %139 : vector<8x256xf32>
    %c3_83 = arith.constant 3 : index
    %c0_84 = arith.constant 0 : index
    %c0_85 = arith.constant 0 : index
    %141 = vector.load %arg5[%c3_83, %c0_84, %c0_85] : memref<9x4x8xf32, #tpu.memory_space<vmem>>, vector<1x4x8xf32>
    %142 = vector.shape_cast %141 : vector<1x4x8xf32> to vector<4x8xf32>
    %cst_86 = arith.constant dense<0.000000e+00> : vector<4x256xf32>
    %143 = tpu.matmul %142, %140, %cst_86 {dimension_numbers = #tpu.dot_dimension_numbers<[1], [0], [0], [1], [0, 0, 1, 1], [], []>} : vector<4x8xf32>, vector<8x256xf32>, vector<4x256xf32> -> vector<4x256xf32>
    %144 = arith.addf %133, %143 : vector<4x256xf32>
    %c4_87 = arith.constant 4 : index
    %c0_88 = arith.constant 0 : index
    %c0_89 = arith.constant 0 : index
    %145 = vector.load %arg2[%c4_87, %c0_88, %c0_89] : memref<9x1x256xf32, #tpu.memory_space<vmem>>, vector<1x1x256xf32>
    %146 = vector.shape_cast %145 : vector<1x1x256xf32> to vector<1x256xf32>
    %147 = vector.broadcast %146 : vector<1x256xf32> to vector<8x256xf32>
    %148 = arith.mulf %101, %147 : vector<8x256xf32>
    %c4_90 = arith.constant 4 : index
    %c0_91 = arith.constant 0 : index
    %c0_92 = arith.constant 0 : index
    %149 = vector.load %arg5[%c4_90, %c0_91, %c0_92] : memref<9x4x8xf32, #tpu.memory_space<vmem>>, vector<1x4x8xf32>
    %150 = vector.shape_cast %149 : vector<1x4x8xf32> to vector<4x8xf32>
    %cst_93 = arith.constant dense<0.000000e+00> : vector<4x256xf32>
    %151 = tpu.matmul %150, %148, %cst_93 {dimension_numbers = #tpu.dot_dimension_numbers<[1], [0], [0], [1], [0, 0, 1, 1], [], []>} : vector<4x8xf32>, vector<8x256xf32>, vector<4x256xf32> -> vector<4x256xf32>
    %152 = arith.addf %144, %151 : vector<4x256xf32>
    %153 = vector.extract_strided_slice %101 {offsets = [0, 1], sizes = [8, 255], strides = [1, 1]} : vector<8x256xf32> to vector<8x255xf32>
    %154 = vector.extract_strided_slice %101 {offsets = [0, 0], sizes = [8, 1], strides = [1, 1]} : vector<8x256xf32> to vector<8x1xf32>
    %155 = tpu.concatenate %153, %154 in 1 : vector<8x255xf32>, vector<8x1xf32> -> vector<8x256xf32>
    %c5_94 = arith.constant 5 : index
    %c0_95 = arith.constant 0 : index
    %c0_96 = arith.constant 0 : index
    %156 = vector.load %arg2[%c5_94, %c0_95, %c0_96] : memref<9x1x256xf32, #tpu.memory_space<vmem>>, vector<1x1x256xf32>
    %157 = vector.shape_cast %156 : vector<1x1x256xf32> to vector<1x256xf32>
    %158 = vector.broadcast %157 : vector<1x256xf32> to vector<8x256xf32>
    %159 = arith.mulf %155, %158 : vector<8x256xf32>
    %c5_97 = arith.constant 5 : index
    %c0_98 = arith.constant 0 : index
    %c0_99 = arith.constant 0 : index
    %160 = vector.load %arg5[%c5_97, %c0_98, %c0_99] : memref<9x4x8xf32, #tpu.memory_space<vmem>>, vector<1x4x8xf32>
    %161 = vector.shape_cast %160 : vector<1x4x8xf32> to vector<4x8xf32>
    %cst_100 = arith.constant dense<0.000000e+00> : vector<4x256xf32>
    %162 = tpu.matmul %161, %159, %cst_100 {dimension_numbers = #tpu.dot_dimension_numbers<[1], [0], [0], [1], [0, 0, 1, 1], [], []>} : vector<4x8xf32>, vector<8x256xf32>, vector<4x256xf32> -> vector<4x256xf32>
    %163 = arith.addf %152, %162 : vector<4x256xf32>
    %164 = vector.extract_strided_slice %101 {offsets = [0, 15], sizes = [8, 241], strides = [1, 1]} : vector<8x256xf32> to vector<8x241xf32>
    %165 = vector.extract_strided_slice %101 {offsets = [0, 0], sizes = [8, 15], strides = [1, 1]} : vector<8x256xf32> to vector<8x15xf32>
    %166 = tpu.concatenate %164, %165 in 1 : vector<8x241xf32>, vector<8x15xf32> -> vector<8x256xf32>
    %c6_101 = arith.constant 6 : index
    %c0_102 = arith.constant 0 : index
    %c0_103 = arith.constant 0 : index
    %167 = vector.load %arg2[%c6_101, %c0_102, %c0_103] : memref<9x1x256xf32, #tpu.memory_space<vmem>>, vector<1x1x256xf32>
    %168 = vector.shape_cast %167 : vector<1x1x256xf32> to vector<1x256xf32>
    %169 = vector.broadcast %168 : vector<1x256xf32> to vector<8x256xf32>
    %170 = arith.mulf %166, %169 : vector<8x256xf32>
    %c6_104 = arith.constant 6 : index
    %c0_105 = arith.constant 0 : index
    %c0_106 = arith.constant 0 : index
    %171 = vector.load %arg5[%c6_104, %c0_105, %c0_106] : memref<9x4x8xf32, #tpu.memory_space<vmem>>, vector<1x4x8xf32>
    %172 = vector.shape_cast %171 : vector<1x4x8xf32> to vector<4x8xf32>
    %cst_107 = arith.constant dense<0.000000e+00> : vector<4x256xf32>
    %173 = tpu.matmul %172, %170, %cst_107 {dimension_numbers = #tpu.dot_dimension_numbers<[1], [0], [0], [1], [0, 0, 1, 1], [], []>} : vector<4x8xf32>, vector<8x256xf32>, vector<4x256xf32> -> vector<4x256xf32>
    %174 = arith.addf %163, %173 : vector<4x256xf32>
    %175 = vector.extract_strided_slice %101 {offsets = [0, 16], sizes = [8, 240], strides = [1, 1]} : vector<8x256xf32> to vector<8x240xf32>
    %176 = vector.extract_strided_slice %101 {offsets = [0, 0], sizes = [8, 16], strides = [1, 1]} : vector<8x256xf32> to vector<8x16xf32>
    %177 = tpu.concatenate %175, %176 in 1 : vector<8x240xf32>, vector<8x16xf32> -> vector<8x256xf32>
    %c7_108 = arith.constant 7 : index
    %c0_109 = arith.constant 0 : index
    %c0_110 = arith.constant 0 : index
    %178 = vector.load %arg2[%c7_108, %c0_109, %c0_110] : memref<9x1x256xf32, #tpu.memory_space<vmem>>, vector<1x1x256xf32>
    %179 = vector.shape_cast %178 : vector<1x1x256xf32> to vector<1x256xf32>
    %180 = vector.broadcast %179 : vector<1x256xf32> to vector<8x256xf32>
    %181 = arith.mulf %177, %180 : vector<8x256xf32>
    %c7_111 = arith.constant 7 : index
    %c0_112 = arith.constant 0 : index
    %c0_113 = arith.constant 0 : index
    %182 = vector.load %arg5[%c7_111, %c0_112, %c0_113] : memref<9x4x8xf32, #tpu.memory_space<vmem>>, vector<1x4x8xf32>
    %183 = vector.shape_cast %182 : vector<1x4x8xf32> to vector<4x8xf32>
    %cst_114 = arith.constant dense<0.000000e+00> : vector<4x256xf32>
    %184 = tpu.matmul %183, %181, %cst_114 {dimension_numbers = #tpu.dot_dimension_numbers<[1], [0], [0], [1], [0, 0, 1, 1], [], []>} : vector<4x8xf32>, vector<8x256xf32>, vector<4x256xf32> -> vector<4x256xf32>
    %185 = arith.addf %174, %184 : vector<4x256xf32>
    %186 = vector.extract_strided_slice %101 {offsets = [0, 17], sizes = [8, 239], strides = [1, 1]} : vector<8x256xf32> to vector<8x239xf32>
    %187 = vector.extract_strided_slice %101 {offsets = [0, 0], sizes = [8, 17], strides = [1, 1]} : vector<8x256xf32> to vector<8x17xf32>
    %188 = tpu.concatenate %186, %187 in 1 : vector<8x239xf32>, vector<8x17xf32> -> vector<8x256xf32>
    %c8_115 = arith.constant 8 : index
    %c0_116 = arith.constant 0 : index
    %c0_117 = arith.constant 0 : index
    %189 = vector.load %arg2[%c8_115, %c0_116, %c0_117] : memref<9x1x256xf32, #tpu.memory_space<vmem>>, vector<1x1x256xf32>
    %190 = vector.shape_cast %189 : vector<1x1x256xf32> to vector<1x256xf32>
    %191 = vector.broadcast %190 : vector<1x256xf32> to vector<8x256xf32>
    %192 = arith.mulf %188, %191 : vector<8x256xf32>
    %c8_118 = arith.constant 8 : index
    %c0_119 = arith.constant 0 : index
    %c0_120 = arith.constant 0 : index
    %193 = vector.load %arg5[%c8_118, %c0_119, %c0_120] : memref<9x4x8xf32, #tpu.memory_space<vmem>>, vector<1x4x8xf32>
    %194 = vector.shape_cast %193 : vector<1x4x8xf32> to vector<4x8xf32>
    %cst_121 = arith.constant dense<0.000000e+00> : vector<4x256xf32>
    %195 = tpu.matmul %194, %192, %cst_121 {dimension_numbers = #tpu.dot_dimension_numbers<[1], [0], [0], [1], [0, 0, 1, 1], [], []>} : vector<4x8xf32>, vector<8x256xf32>, vector<4x256xf32> -> vector<4x256xf32>
    %196 = arith.addf %185, %195 : vector<4x256xf32>
    %c0_122 = arith.constant 0 : index
    %c0_123 = arith.constant 0 : index
    %197 = vector.load %arg6[%c0_122, %c0_123] : memref<4x1xf32, #tpu.memory_space<vmem>>, vector<4x1xf32>
    %198 = vector.broadcast %197 : vector<4x1xf32> to vector<4x256xf32>
    %199 = arith.addf %196, %198 : vector<4x256xf32>
    %cst_124 = arith.constant 0.000000e+00 : f32
    %200 = vector.broadcast %cst_124 : f32 to vector<4x256xf32>
    %201 = arith.maximumf %199, %200 : vector<4x256xf32>
    %c0_125 = arith.constant 0 : index
    %c0_126 = arith.constant 0 : index
    %c0_127 = arith.constant 0 : index
    %202 = vector.load %arg7[%c0_125, %c0_126, %c0_127] : memref<1x4x256xf32, #tpu.memory_space<vmem>>, vector<1x4x256xf32>
    %203 = vector.shape_cast %202 : vector<1x4x256xf32> to vector<4x256xf32>
    %204 = vector.shape_cast %201 : vector<4x256xf32> to vector<1x4x256xf32>
    tpu.vector_store %arg7[%c0_125, %c0_126, %c0_127], %204 {strides = array<i32>} : memref<1x4x256xf32, #tpu.memory_space<vmem>>, vector<1x4x256xf32>,
    return
  }
  func.func @transform_0(%arg0: i32) -> (i32, i32, i32) {
    %c0_i32 = arith.constant 0 : i32
    %c0_i32_0 = arith.constant 0 : i32
    %c0_i32_1 = arith.constant 0 : i32
    return %arg0, %c0_i32, %c0_i32_0 : i32, i32, i32
  }
  func.func @transform_1(%arg0: i32) -> (i32, i32, i32) {
    %c0_i32 = arith.constant 0 : i32
    %c0_i32_0 = arith.constant 0 : i32
    %c0_i32_1 = arith.constant 0 : i32
    %c0_i32_2 = arith.constant 0 : i32
    return %c0_i32, %c0_i32_0, %c0_i32_1 : i32, i32, i32
  }
  func.func @transform_2(%arg0: i32) -> (i32, i32, i32) {
    %c0_i32 = arith.constant 0 : i32
    %c0_i32_0 = arith.constant 0 : i32
    %c0_i32_1 = arith.constant 0 : i32
    %c0_i32_2 = arith.constant 0 : i32
    return %c0_i32, %c0_i32_0, %c0_i32_1 : i32, i32, i32
  }
  func.func @transform_3(%arg0: i32) -> (i32, i32) {
    %c0_i32 = arith.constant 0 : i32
    %c0_i32_0 = arith.constant 0 : i32
    %c0_i32_1 = arith.constant 0 : i32
    return %c0_i32, %c0_i32_0 : i32, i32
  }
  func.func @transform_4(%arg0: i32) -> (i32, i32, i32) {
    %c0_i32 = arith.constant 0 : i32
    %c0_i32_0 = arith.constant 0 : i32
    %c0_i32_1 = arith.constant 0 : i32
    %c0_i32_2 = arith.constant 0 : i32
    return %c0_i32, %c0_i32_0, %c0_i32_1 : i32, i32, i32
  }
  func.func @transform_5(%arg0: i32) -> (i32, i32) {
    %c0_i32 = arith.constant 0 : i32
    %c0_i32_0 = arith.constant 0 : i32
    %c0_i32_1 = arith.constant 0 : i32
    return %c0_i32, %c0_i32_0 : i32, i32
  }
  func.func @transform_6(%arg0: i32) -> (i32, i32, i32) {
    %c0_i32 = arith.constant 0 : i32
    %c0_i32_0 = arith.constant 0 : i32
    %c0_i32_1 = arith.constant 0 : i32
    return %arg0, %c0_i32, %c0_i32_0 : i32, i32, i32
  }
}

</mosaic_0001>

<llo_original>
// kernel: _lambda_.1
$region0: #{_lambda_.1}
  #allocation0 [shape = 'u32[]', space=smem, size = 0x4, offset = 0x4, fixed_abs, tag = 'smem constant byte address 0x4 - core index']
  #allocation1 [shape = 'u32[144,128]{1,0:T(1,128)}', space=vmem, size = 0x12000, scoped, tag = 'internal scratch']
  %s0 = inlined_call_operand.vmem [shape: f32[2,4,256], index: 0, kind: input, shape index: {}]
  %s1 = inlined_call_operand.vmem [shape: f32[9,1,256], index: 1, kind: input, shape index: {}]
  %s2 = inlined_call_operand.vmem [shape: f32[9,8,4], index: 2, kind: input, shape index: {}]
  %s3 = inlined_call_operand.vmem [shape: f32[8,1], index: 3, kind: input, shape index: {}]
  %s4 = inlined_call_operand.vmem [shape: f32[9,4,8], index: 4, kind: input, shape index: {}]
  %s5 = inlined_call_operand.vmem [shape: f32[4,1], index: 5, kind: input, shape index: {}]
  %s6 = inlined_call_operand.vmem [shape: f32[2,4,256], index: 6, kind: output, shape index: {}]
  %s7 = sld [smem:[#allocation0]]
  $region57: #{_lambda_.1} parent=0
    _
  %s9 = ssub.s32 1, %s7
  %s10 = scalar_select 0, %s9, %s7
  loop: start=0, step=1, limit=4
  $region2: #{_lambda_.1} parent=0 // loop_pre_header
    _
  $region3: #{_lambda_.1} parent=0 // loop_header
    %s12 = sphi 0, %s16
    %p13 = scmp.ge.s32.totalorder %s12, 4
    %s22 = sphi 0, %s24
    %s25 = sphi 0, %s22
    %s26 = sphi 0, %s25
    %s42 = sphi 0, %s26
    %s46 = sphi 0, %s46
    %s48 = sphi 0, %s46
    %s49 = sphi 0, %s48
    %s63 = sphi 0, %s49
    %s67 = sphi 0, %s67
    %s69 = sphi 0, %s67
    %s70 = sphi 0, %s69
    %s84 = sphi 0, %s70
    %s88 = sphi 0, %s88
    %s90 = sphi 0, %s88
    %s91 = sphi 0, %s90
    %s105 = sphi 0, %s91
    %s109 = sphi 0, %s109
    %s111 = sphi 0, %s109
    %s112 = sphi 0, %s111
    %s126 = sphi 0, %s112
    %s130 = sphi 0, %s130
    %s132 = sphi 0, %s130
    %s133 = sphi 0, %s132
    %s147 = sphi 0, %s133
    %s153 = sphi 0, %s155
    %s156 = sphi 0, %s153
    %s157 = sphi 0, %s156
    %s173 = sphi 0, %s157
  $region4: #{_lambda_.1} parent=0 // loop_header_branch
    %15 = sbr.rel (%p13) target = $region8
  $region5: #{_lambda_.1} parent=0 // loop_body
    %s17 = ssub.s32 %s12, 1
    %s18 = ssub.s32 %s12, 2
    %s19 = sadd.s32 %s12, 1
    %s20 = ssub.s32 %s12, %s19
    %p21 = scmp.eq.s32.totalorder %s20, 0
    %s23 = sadd.s32 %s22, 1
    %s24 = scalar_select %p21, %s22, %s23
    %p27 = pneg %p21
    %p28 = scmp.eq.s32.totalorder %s12, 1
    %p29 = por %p27, %p28
    %p30 = scmp.ne.s32.totalorder %s22, %s25
    %p31 = scmp.eq.s32.totalorder %s12, 0
    %p32 = por %p30, %p31
    %p33 = scmp.ne.s32.totalorder %s22, %s25
    %p34 = scmp.eq.s32.totalorder %s17, 1
    %p35 = por %p33, %p34
    %p36 = scmp.ne.s32.totalorder %s25, %s26
    %p37 = scmp.eq.s32.totalorder %s17, 0
    %p38 = por %p36, %p37
    %p39 = scmp.ne.s32.totalorder %s25, %s26
    %p40 = scmp.eq.s32.totalorder %s18, 1
    %p41 = por %p39, %p40
    %p43 = scmp.ne.s32.totalorder %s26, %s42
    %p44 = scmp.eq.s32.totalorder %s18, 0
    %p45 = por %p43, %p44
    %s47 = sadd.s32 %s46, 1
    %p50 = scmp.eq.s32.totalorder %s12, 1
    %p51 = scmp.ne.s32.totalorder %s46, %s48
    %p52 = scmp.eq.s32.totalorder %s12, 0
    %p53 = por %p51, %p52
    %p54 = scmp.ne.s32.totalorder %s46, %s48
    %p55 = scmp.eq.s32.totalorder %s17, 1
    %p56 = por %p54, %p55
    %p57 = scmp.ne.s32.totalorder %s48, %s49
    %p58 = scmp.eq.s32.totalorder %s17, 0
    %p59 = por %p57, %p58
    %p60 = scmp.ne.s32.totalorder %s48, %s49
    %p61 = scmp.eq.s32.totalorder %s18, 1
    %p62 = por %p60, %p61
    %p64 = scmp.ne.s32.totalorder %s49, %s63
    %p65 = scmp.eq.s32.totalorder %s18, 0
    %p66 = por %p64, %p65
    %s68 = sadd.s32 %s67, 1
    %p71 = scmp.eq.s32.totalorder %s12, 1
    %p72 = scmp.ne.s32.totalorder %s67, %s69
    %p73 = scmp.eq.s32.totalorder %s12, 0
    %p74 = por %p72, %p73
    %p75 = scmp.ne.s32.totalorder %s67, %s69
    %p76 = scmp.eq.s32.totalorder %s17, 1
    %p77 = por %p75, %p76
    %p78 = scmp.ne.s32.totalorder %s69, %s70
    %p79 = scmp.eq.s32.totalorder %s17, 0
    %p80 = por %p78, %p79
    %p81 = scmp.ne.s32.totalorder %s69, %s70
    %p82 = scmp.eq.s32.totalorder %s18, 1
    %p83 = por %p81, %p82
    %p85 = scmp.ne.s32.totalorder %s70, %s84
    %p86 = scmp.eq.s32.totalorder %s18, 0
    %p87 = por %p85, %p86
    %s89 = sadd.s32 %s88, 1
    %p92 = scmp.eq.s32.totalorder %s12, 1
    %p93 = scmp.ne.s32.totalorder %s88, %s90
    %p94 = scmp.eq.s32.totalorder %s12, 0
    %p95 = por %p93, %p94
    %p96 = scmp.ne.s32.totalorder %s88, %s90
    %p97 = scmp.eq.s32.totalorder %s17, 1
    %p98 = por %p96, %p97
    %p99 = scmp.ne.s32.totalorder %s90, %s91
    %p100 = scmp.eq.s32.totalorder %s17, 0
    %p101 = por %p99, %p100
    %p102 = scmp.ne.s32.totalorder %s90, %s91
    %p103 = scmp.eq.s32.totalorder %s18, 1
    %p104 = por %p102, %p103
    %p106 = scmp.ne.s32.totalorder %s91, %s105
    %p107 = scmp.eq.s32.totalorder %s18, 0
    %p108 = por %p106, %p107
    %s110 = sadd.s32 %s109, 1
    %p113 = scmp.eq.s32.totalorder %s12, 1
    %p114 = scmp.ne.s32.totalorder %s109, %s111
    %p115 = scmp.eq.s32.totalorder %s12, 0
    %p116 = por %p114, %p115
    %p117 = scmp.ne.s32.totalorder %s109, %s111
    %p118 = scmp.eq.s32.totalorder %s17, 1
    %p119 = por %p117, %p118
    %p120 = scmp.ne.s32.totalorder %s111, %s112
    %p121 = scmp.eq.s32.totalorder %s17, 0
    %p122 = por %p120, %p121
    %p123 = scmp.ne.s32.totalorder %s111, %s112
    %p124 = scmp.eq.s32.totalorder %s18, 1
    %p125 = por %p123, %p124
    %p127 = scmp.ne.s32.totalorder %s112, %s126
    %p128 = scmp.eq.s32.totalorder %s18, 0
    %p129 = por %p127, %p128
    %s131 = sadd.s32 %s130, 1
    %p134 = scmp.eq.s32.totalorder %s12, 1
    %p135 = scmp.ne.s32.totalorder %s130, %s132
    %p136 = scmp.eq.s32.totalorder %s12, 0
    %p137 = por %p135, %p136
    %p138 = scmp.ne.s32.totalorder %s130, %s132
    %p139 = scmp.eq.s32.totalorder %s17, 1
    %p140 = por %p138, %p139
    %p141 = scmp.ne.s32.totalorder %s132, %s133
    %p142 = scmp.eq.s32.totalorder %s17, 0
    %p143 = por %p141, %p142
    %p144 = scmp.ne.s32.totalorder %s132, %s133
    %p145 = scmp.eq.s32.totalorder %s18, 1
    %p146 = por %p144, %p145
    %p148 = scmp.ne.s32.totalorder %s133, %s147
    %p149 = scmp.eq.s32.totalorder %s18, 0
    %p150 = por %p148, %p149
    %s151 = ssub.s32 %s12, %s19
    %p152 = scmp.eq.s32.totalorder %s151, 0
    %s154 = sadd.s32 %s153, 1
    %s155 = scalar_select %p152, %s153, %s154
    %p158 = pneg %p152
    %p159 = scmp.eq.s32.totalorder %s12, 1
    %p160 = por %p158, %p159
    %p161 = scmp.ne.s32.totalorder %s153, %s156
    %p162 = scmp.eq.s32.totalorder %s12, 0
    %p163 = por %p161, %p162
    %p164 = scmp.ne.s32.totalorder %s153, %s156
    %p165 = scmp.eq.s32.totalorder %s17, 1
    %p166 = por %p164, %p165
    %p167 = scmp.ne.s32.totalorder %s156, %s157
    %p168 = scmp.eq.s32.totalorder %s17, 0
    %p169 = por %p167, %p168
    %p170 = scmp.ne.s32.totalorder %s156, %s157
    %p171 = scmp.eq.s32.totalorder %s18, 1
    %p172 = por %p170, %p171
    %p174 = scmp.ne.s32.totalorder %s157, %s173
    %p175 = scmp.eq.s32.totalorder %s18, 0
    %p176 = por %p174, %p175
    %p177 = scmp.le.s32.totalorder 1, %s12
    %p178 = scmp.lt.s32.totalorder %s12, 3
    %p179 = pnand %p177, %p178
    %p180 = pneg %p179
    // Predicated region
    $region9: #{_lambda_.1} parent=5 // pred_check
      _
    $region10: #{_lambda_.1} parent=5 // pred_check_branch
      %182 = sbr.rel (%p179) target = $region12
    $region11: #{_lambda_.1} parent=5 // pred_region
      %s183 = ssub.s32 %s12, 1
      // Predicated region
      $region13: #{_lambda_.1} parent=11 // pred_check
        %p184 = pneg %p59
      $region14: #{_lambda_.1} parent=11 // pred_check_branch
        %186 = sbr.rel (%p184) target = $region16
      $region15: #{_lambda_.1} parent=11 // pred_region
        _
      $region16: #{_lambda_.1} parent=11 // pred_fallthru
        _
      // Predicated region
      $region17: #{_lambda_.1} parent=11 // pred_check
        %p187 = pneg %p80
      $region18: #{_lambda_.1} parent=11 // pred_check_branch
        %189 = sbr.rel (%p187) target = $region20
      $region19: #{_lambda_.1} parent=11 // pred_region
        _
      $region20: #{_lambda_.1} parent=11 // pred_fallthru
        _
      // Predicated region
      $region21: #{_lambda_.1} parent=11 // pred_check
        %p190 = pneg %p101
      $region22: #{_lambda_.1} parent=11 // pred_check_branch
        %192 = sbr.rel (%p190) target = $region24
      $region23: #{_lambda_.1} parent=11 // pred_region
        _
      $region24: #{_lambda_.1} parent=11 // pred_fallthru
        _
      // Predicated region
      $region25: #{_lambda_.1} parent=11 // pred_check
        %p193 = pneg %p122
      $region26: #{_lambda_.1} parent=11 // pred_check_branch
        %195 = sbr.rel (%p193) target = $region28
      $region27: #{_lambda_.1} parent=11 // pred_region
        _
      $region28: #{_lambda_.1} parent=11 // pred_fallthru
        _
      // Predicated region
      $region29: #{_lambda_.1} parent=11 // pred_check
        %p196 = pneg %p143
      $region30: #{_lambda_.1} parent=11 // pred_check_branch
        %198 = sbr.rel (%p196) target = $region32
      $region31: #{_lambda_.1} parent=11 // pred_region
        _
      $region32: #{_lambda_.1} parent=11 // pred_fallthru
        _
    $region12: #{_lambda_.1} parent=5 // pred_fallthru
      _
    %p199 = scmp.lt.s32.totalorder %s12, 2
    // Predicated region
    $region33: #{_lambda_.1} parent=5 // pred_check
      %p200 = pneg %p199
    $region34: #{_lambda_.1} parent=5 // pred_check_branch
      %202 = sbr.rel (%p200) target = $region36
    $region35: #{_lambda_.1} parent=5 // pred_region
      // Predicated region
      $region37: #{_lambda_.1} parent=35 // pred_check
        %p203 = pneg %p32
      $region38: #{_lambda_.1} parent=35 // pred_check_branch
        %205 = sbr.rel (%p203) target = $region40
      $region39: #{_lambda_.1} parent=35 // pred_region
        %p206 = scmp.lt.s32.totalorder %s12, 1
        %s207 = scalar_select %p206, %s12, 1
        %s208 = smul.addr %s207, 2
        %s209 = smul.addr %s208, 4
        %s210 = scalar_lea.vmem %s0, %s209
      $region40: #{_lambda_.1} parent=35 // pred_fallthru
        _
    $region36: #{_lambda_.1} parent=5 // pred_fallthru
      _
    %p211 = scmp.le.s32.totalorder 1, %s12
    %p212 = scmp.lt.s32.totalorder %s12, 3
    %p213 = pnand %p211, %p212
    %p214 = pneg %p213
    // Predicated region
    $region41: #{_lambda_.1} parent=5 // pred_check
      _
    $region42: #{_lambda_.1} parent=5 // pred_check_branch
      %216 = sbr.rel (%p213) target = $region44
    $region43: #{_lambda_.1} parent=5 // pred_region
      %s217 = ssub.s32 %s12, 1
      %p218 = scmp.lt.s32.totalorder %s17, 1
      %s219 = scalar_select %p218, %s17, 1
      %s220 = smul.addr %s219, 2
      %s221 = smul.addr %s220, 4
      %s222 = scalar_lea.vmem %s0, %s221
      %p223 = pneg %p38
      %p224 = pneg %p35
      %p225 = pneg %p59
      %p226 = pneg %p56
      %p227 = pneg %p80
      %p228 = pneg %p77
      %p229 = pneg %p101
      %p230 = pneg %p98
      %p231 = pneg %p122
      %p232 = pneg %p119
      %p233 = pneg %p143
      %p234 = pneg %p140
      %p235 = pneg %p169
      %p236 = pneg %p166
      %p237 = scmp.lt.s32.totalorder %s17, 1
      %s238 = scalar_select %p237, %s17, 1
      %s239 = smul.addr %s238, 2
      %s240 = smul.addr %s239, 4
      %s241 = scalar_lea.vmem %s6, %s240
      %p242 = scmp.lt.s32.totalorder %s17, 1
      %s243 = scalar_select %p242, %s17, 1
      %s244 = smul.addr %s243, 2
      %s245 = smul.addr %s244, 4
      %s246 = scalar_lea.vmem %s0, %s245
      %p247 = scmp.lt.s32.totalorder %s17, 1
      %s248 = scalar_select %p247, %s17, 1
      %s249 = smul.addr %s248, 2
      %s250 = smul.addr %s249, 4
      %s251 = scalar_lea.vmem %s6, %s250
      %v252 = vld [vmem:[%s246] sm:$0xff]
      %v254 = vcombine.high %v252, %v252
      %255 = vrot.lane.b32.xlu0 %v254, 17
      %v256 = vpop.permute.xlu0 %255
      %258 = vrot.lane.b32.xlu0 %v252, 17
      %v259 = vpop.permute.xlu0 %258
      %vm260 = vcmask 138240
      %v261 = vsel %vm260, %v259, %v256
      %v264 = vsel %vm260, %v256, %v259
      %v265 = vld [vmem:[%s1] sm:$0x3]
      %v267 = vlaneseq
      %v268 = vshrl.u32 %v267, 7
      %v269 = vsub.s32 0, %v268
      %v270 = vrot.slane %v265, %v269
      %v271 = vlaneseq
      %v272 = vshrl.u32 %v271, 7
      %v273 = vsub.s32 1, %v272
      %v274 = vrot.slane %v265, %v273
      %v277 = vmul.f32 %v264, %v270
      %v278 = vmul.f32 %v261, %v274
      %v279 = vld [vmem:[%s2] sm:$0xff]
      %280 = vrot.lane.b32.xlu0 %v254, 16
      %v281 = vpop.permute.xlu0 %280
      %283 = vrot.lane.b32.xlu0 %v252, 16
      %v284 = vpop.permute.xlu0 %283
      %vm285 = vcmask 130048
      %v286 = vsel %vm285, %v284, %v281
      %v289 = vsel %vm285, %v281, %v284
      %s290 = scalar_lea.vmem %s1, 2
      %v291 = vld [vmem:[%s290] sm:$0x3]
      %v293 = vlaneseq
      %v294 = vshrl.u32 %v293, 7
      %v295 = vsub.s32 0, %v294
      %v296 = vrot.slane %v291, %v295
      %v297 = vlaneseq
      %v298 = vshrl.u32 %v297, 7
      %v299 = vsub.s32 1, %v298
      %v300 = vrot.slane %v291, %v299
      %v303 = vmul.f32 %v289, %v296
      %v304 = vmul.f32 %v286, %v300
      %s305 = scalar_lea.vmem %s2, 8
      %v306 = vld [vmem:[%s305] sm:$0xff]
      %vm307 = vcmask 31744
      %v309 = vsel %vm307, %v306, 0
      %vm311 = vcmask 1043456
      %v313 = vsel %vm311, %v303, 0
      %v316 = vsel %vm311, %v304, 0
      %318 = vmatprep.subr.mxu0 %v316
      %319 = vmatpush1.msra.mxu0 %v313
      %320 = vmatprep.subr.mxu0 0.0
      %321 = vmatpush1.msra.mxu0 0.0
      %322 = vmatprep.subr.mxu0 0.0
      %323 = vmatpush1.msra.mxu0 0.0
      %324 = vmatprep.subr.mxu0 0.0
      %325 = vmatpush1.msra.mxu0 0.0
      %326 = vmatprep.subr.mxu0 0.0
      %327 = vmatpush1.msra.mxu0 0.0
      %328 = vmatprep.subr.mxu0 0.0
      %329 = vmatpush1.msra.mxu0 0.0
      %330 = vmatprep.subr.mxu0 0.0
      %331 = vmatpush1.msra.mxu0 0.0
      %332 = vmatprep.subr.mxu0 0.0
      %333 = vmatpush1.msra.mxu0 0.0
      %334 = vmatprep.subr.mxu0 0.0
      %335 = vmatpush1.msra.mxu0 0.0
      %336 = vmatprep.subr.mxu0 0.0
      %337 = vmatpush1.msra.mxu0 0.0
      %338 = vmatprep.subr.mxu0 0.0
      %339 = vmatpush1.msra.mxu0 0.0
      %340 = vmatprep.subr.mxu0 0.0
      %341 = vmatpush1.msra.mxu0 0.0
      %342 = vmatprep.subr.mxu0 0.0
      %343 = vmatpush1.msra.mxu0 0.0
      %344 = vmatprep.subr.mxu0 0.0
      %345 = vmatpush1.msra.mxu0 0.0
      %346 = vmatprep.subr.mxu0 0.0
      %347 = vmatpush1.msra.mxu0 0.0
      %348 = vmatprep.subr.mxu0 0.0
      %349 = vmatpush1.msra.mxu0 0.0
      %350 = vmatprep.subr.mxu0 0.0
      %351 = vmatpush1.msra.mxu0 0.0
      %352 = vmatprep.subr.mxu0 0.0
      %353 = vmatpush1.msra.mxu0 0.0
      %354 = vmatprep.subr.mxu0 0.0
      %355 = vmatpush1.msra.mxu0 0.0
      %356 = vmatprep.subr.mxu0 0.0
      %357 = vmatpush1.msra.mxu0 0.0
      %358 = vmatprep.subr.mxu0 0.0
      %359 = vmatpush1.msra.mxu0 0.0
      %360 = vmatprep.subr.mxu0 0.0
      %361 = vmatpush1.msra.mxu0 0.0
      %362 = vmatprep.subr.mxu0 0.0
      %363 = vmatpush1.msra.mxu0 0.0
      %364 = vmatprep.subr.mxu0 0.0
      %365 = vmatpush1.msra.mxu0 0.0
      %366 = vmatprep.subr.mxu0 0.0
      %367 = vmatpush1.msra.mxu0 0.0
      %368 = vmatprep.subr.mxu0 0.0
      %369 = vmatpush1.msra.mxu0 0.0
      %370 = vmatprep.subr.mxu0 0.0
      %371 = vmatpush1.msra.mxu0 0.0
      %372 = vmatprep.subr.mxu0 0.0
      %373 = vmatpush1.msra.mxu0 0.0
      %374 = vmatprep.subr.mxu0 0.0
      %375 = vmatpush1.msra.mxu0 0.0
      %376 = vmatprep.subr.mxu0 0.0
      %377 = vmatpush1.msra.mxu0 0.0
      %378 = vmatprep.subr.mxu0 0.0
      %379 = vmatpush1.msra.mxu0 0.0
      %380 = vmatprep.subr.mxu0 0.0
      %381 = vmatpush1.msra.mxu0 0.0
      %382 = vmatprep.mubr.f32.mxu0 0.0
      %383 = vmatmul.mubr.f32.gmra.mrb[0].mxu0 %v309
      %v384 = vpop.f32.mrb[0].mxu0
      %v385 = vadd.f32 0.0, %v384
      %v386 = vpop.f32.mrb[0].mxu0
      %v387 = vadd.f32 0.0, %v386
      %388 = vdwg.mxu0
      %v390 = vsel %vm307, %v279, 0
      %v393 = vsel %vm311, %v277, 0
      %v396 = vsel %vm311, %v278, 0
      %398 = vmatprep.subr.mxu0 %v396
      %399 = vmatpush1.msra.mxu0 %v393
      %400 = vmatprep.subr.mxu0 0.0
      %401 = vmatpush1.msra.mxu0 0.0
      %402 = vmatprep.subr.mxu0 0.0
      %403 = vmatpush1.msra.mxu0 0.0
      %404 = vmatprep.subr.mxu0 0.0
      %405 = vmatpush1.msra.mxu0 0.0
      %406 = vmatprep.subr.mxu0 0.0
      %407 = vmatpush1.msra.mxu0 0.0
      %408 = vmatprep.subr.mxu0 0.0
      %409 = vmatpush1.msra.mxu0 0.0
      %410 = vmatprep.subr.mxu0 0.0
      %411 = vmatpush1.msra.mxu0 0.0
      %412 = vmatprep.subr.mxu0 0.0
      %413 = vmatpush1.msra.mxu0 0.0
      %414 = vmatprep.subr.mxu0 0.0
      %415 = vmatpush1.msra.mxu0 0.0
      %416 = vmatprep.subr.mxu0 0.0
      %417 = vmatpush1.msra.mxu0 0.0
      %418 = vmatprep.subr.mxu0 0.0
      %419 = vmatpush1.msra.mxu0 0.0
      %420 = vmatprep.subr.mxu0 0.0
      %421 = vmatpush1.msra.mxu0 0.0
      %422 = vmatprep.subr.mxu0 0.0
      %423 = vmatpush1.msra.mxu0 0.0
      %424 = vmatprep.subr.mxu0 0.0
      %425 = vmatpush1.msra.mxu0 0.0
      %426 = vmatprep.subr.mxu0 0.0
      %427 = vmatpush1.msra.mxu0 0.0
      %428 = vmatprep.subr.mxu0 0.0
      %429 = vmatpush1.msra.mxu0 0.0
      %430 = vmatprep.subr.mxu0 0.0
      %431 = vmatpush1.msra.mxu0 0.0
      %432 = vmatprep.subr.mxu0 0.0
      %433 = vmatpush1.msra.mxu0 0.0
      %434 = vmatprep.subr.mxu0 0.0
      %435 = vmatpush1.msra.mxu0 0.0
      %436 = vmatprep.subr.mxu0 0.0
      %437 = vmatpush1.msra.mxu0 0.0
      %438 = vmatprep.subr.mxu0 0.0
      %439 = vmatpush1.msra.mxu0 0.0
      %440 = vmatprep.subr.mxu0 0.0
      %441 = vmatpush1.msra.mxu0 0.0
      %442 = vmatprep.subr.mxu0 0.0
      %443 = vmatpush1.msra.mxu0 0.0
      %444 = vmatprep.subr.mxu0 0.0
      %445 = vmatpush1.msra.mxu0 0.0
      %446 = vmatprep.subr.mxu0 0.0
      %447 = vmatpush1.msra.mxu0 0.0
      %448 = vmatprep.subr.mxu0 0.0
      %449 = vmatpush1.msra.mxu0 0.0
      %450 = vmatprep.subr.mxu0 0.0
      %451 = vmatpush1.msra.mxu0 0.0
      %452 = vmatprep.subr.mxu0 0.0
      %453 = vmatpush1.msra.mxu0 0.0
      %454 = vmatprep.subr.mxu0 0.0
      %455 = vmatpush1.msra.mxu0 0.0
      %456 = vmatprep.subr.mxu0 0.0
      %457 = vmatpush1.msra.mxu0 0.0
      %458 = vmatprep.subr.mxu0 0.0
      %459 = vmatpush1.msra.mxu0 0.0
      %460 = vmatprep.subr.mxu0 0.0
      %461 = vmatpush1.msra.mxu0 0.0
      %462 = vmatprep.mubr.f32.mxu0 0.0
      %463 = vmatmul.mubr.f32.gmra.mrb[0].mxu0 %v390
      %v464 = vpop.f32.mrb[0].mxu0
      %v465 = vadd.f32 %v385, %v464
      %v466 = vpop.f32.mrb[0].mxu0
      %v467 = vadd.f32 %v387, %v466
      %468 = vdwg.mxu0
      %469 = vrot.lane.b32.xlu0 %v254, 15
      %v470 = vpop.permute.xlu0 %469
      %472 = vrot.lane.b32.xlu0 %v252, 15
      %v473 = vpop.permute.xlu0 %472
      %vm474 = vcmask 121856
      %v475 = vsel %vm474, %v473, %v470
      %v478 = vsel %vm474, %v470, %v473
      %s479 = scalar_lea.vmem %s1, 4
      %v480 = vld [vmem:[%s479] sm:$0x3]
      %v482 = vlaneseq
      %v483 = vshrl.u32 %v482, 7
      %v484 = vsub.s32 0, %v483
      %v485 = vrot.slane %v480, %v484
      %v486 = vlaneseq
      %v487 = vshrl.u32 %v486, 7
      %v488 = vsub.s32 1, %v487
      %v489 = vrot.slane %v480, %v488
      %v492 = vmul.f32 %v478, %v485
      %v493 = vmul.f32 %v475, %v489
      %s494 = scalar_lea.vmem %s2, 16
      %v495 = vld [vmem:[%s494] sm:$0xff]
      %v497 = vsel %vm307, %v495, 0
      %v500 = vsel %vm311, %v492, 0
      %v503 = vsel %vm311, %v493, 0
      %505 = vmatprep.subr.mxu0 %v503
      %506 = vmatpush1.msra.mxu0 %v500
      %507 = vmatprep.subr.mxu0 0.0
      %508 = vmatpush1.msra.mxu0 0.0
      %509 = vmatprep.subr.mxu0 0.0
      %510 = vmatpush1.msra.mxu0 0.0
      %511 = vmatprep.subr.mxu0 0.0
      %512 = vmatpush1.msra.mxu0 0.0
      %513 = vmatprep.subr.mxu0 0.0
      %514 = vmatpush1.msra.mxu0 0.0
      %515 = vmatprep.subr.mxu0 0.0
      %516 = vmatpush1.msra.mxu0 0.0
      %517 = vmatprep.subr.mxu0 0.0
      %518 = vmatpush1.msra.mxu0 0.0
      %519 = vmatprep.subr.mxu0 0.0
      %520 = vmatpush1.msra.mxu0 0.0
      %521 = vmatprep.subr.mxu0 0.0
      %522 = vmatpush1.msra.mxu0 0.0
      %523 = vmatprep.subr.mxu0 0.0
      %524 = vmatpush1.msra.mxu0 0.0
      %525 = vmatprep.subr.mxu0 0.0
      %526 = vmatpush1.msra.mxu0 0.0
      %527 = vmatprep.subr.mxu0 0.0
      %528 = vmatpush1.msra.mxu0 0.0
      %529 = vmatprep.subr.mxu0 0.0
      %530 = vmatpush1.msra.mxu0 0.0
      %531 = vmatprep.subr.mxu0 0.0
      %532 = vmatpush1.msra.mxu0 0.0
      %533 = vmatprep.subr.mxu0 0.0
      %534 = vmatpush1.msra.mxu0 0.0
      %535 = vmatprep.subr.mxu0 0.0
      %536 = vmatpush1.msra.mxu0 0.0
      %537 = vmatprep.subr.mxu0 0.0
      %538 = vmatpush1.msra.mxu0 0.0
      %539 = vmatprep.subr.mxu0 0.0
      %540 = vmatpush1.msra.mxu0 0.0
      %541 = vmatprep.subr.mxu0 0.0
      %542 = vmatpush1.msra.mxu0 0.0
      %543 = vmatprep.subr.mxu0 0.0
      %544 = vmatpush1.msra.mxu0 0.0
      %545 = vmatprep.subr.mxu0 0.0
      %546 = vmatpush1.msra.mxu0 0.0
      %547 = vmatprep.subr.mxu0 0.0
      %548 = vmatpush1.msra.mxu0 0.0
      %549 = vmatprep.subr.mxu0 0.0
      %550 = vmatpush1.msra.mxu0 0.0
      %551 = vmatprep.subr.mxu0 0.0
      %552 = vmatpush1.msra.mxu0 0.0
      %553 = vmatprep.subr.mxu0 0.0
      %554 = vmatpush1.msra.mxu0 0.0
      %555 = vmatprep.subr.mxu0 0.0
      %556 = vmatpush1.msra.mxu0 0.0
      %557 = vmatprep.subr.mxu0 0.0
      %558 = vmatpush1.msra.mxu0 0.0
      %559 = vmatprep.subr.mxu0 0.0
      %560 = vmatpush1.msra.mxu0 0.0
      %561 = vmatprep.subr.mxu0 0.0
      %562 = vmatpush1.msra.mxu0 0.0
      %563 = vmatprep.subr.mxu0 0.0
      %564 = vmatpush1.msra.mxu0 0.0
      %565 = vmatprep.subr.mxu0 0.0
      %566 = vmatpush1.msra.mxu0 0.0
      %567 = vmatprep.subr.mxu0 0.0
      %568 = vmatpush1.msra.mxu0 0.0
      %569 = vmatprep.mubr.f32.mxu0 0.0
      %570 = vmatmul.mubr.f32.gmra.mrb[0].mxu0 %v497
      %v571 = vpop.f32.mrb[0].mxu0
      %v572 = vadd.f32 0.0, %v571
      %v573 = vpop.f32.mrb[0].mxu0
      %v574 = vadd.f32 0.0, %v573
      %575 = vdwg.mxu0
      %v576 = vadd.f32 %v465, %v572
      %v577 = vadd.f32 %v467, %v574
      %578 = vrot.lane.b32.xlu0 %v254, 1
      %v579 = vpop.permute.xlu0 %578
      %581 = vrot.lane.b32.xlu0 %v252, 1
      %v582 = vpop.permute.xlu0 %581
      %vm583 = vcmask 7168
      %v584 = vsel %vm583, %v582, %v579
      %v587 = vsel %vm583, %v579, %v582
      %s588 = scalar_lea.vmem %s1, 6
      %v589 = vld [vmem:[%s588] sm:$0x3]
      %v591 = vlaneseq
      %v592 = vshrl.u32 %v591, 7
      %v593 = vsub.s32 0, %v592
      %v594 = vrot.slane %v589, %v593
      %v595 = vlaneseq
      %v596 = vshrl.u32 %v595, 7
      %v597 = vsub.s32 1, %v596
      %v598 = vrot.slane %v589, %v597
      %v601 = vmul.f32 %v587, %v594
      %v602 = vmul.f32 %v584, %v598
      %s603 = scalar_lea.vmem %s2, 24
      %v604 = vld [vmem:[%s603] sm:$0xff]
      %v606 = vsel %vm307, %v604, 0
      %v609 = vsel %vm311, %v601, 0
      %v612 = vsel %vm311, %v602, 0
      %614 = vmatprep.subr.mxu0 %v612
      %615 = vmatpush1.msra.mxu0 %v609
      %616 = vmatprep.subr.mxu0 0.0
      %617 = vmatpush1.msra.mxu0 0.0
      %618 = vmatprep.subr.mxu0 0.0
      %619 = vmatpush1.msra.mxu0 0.0
      %620 = vmatprep.subr.mxu0 0.0
      %621 = vmatpush1.msra.mxu0 0.0
      %622 = vmatprep.subr.mxu0 0.0
      %623 = vmatpush1.msra.mxu0 0.0
      %624 = vmatprep.subr.mxu0 0.0
      %625 = vmatpush1.msra.mxu0 0.0
      %626 = vmatprep.subr.mxu0 0.0
      %627 = vmatpush1.msra.mxu0 0.0
      %628 = vmatprep.subr.mxu0 0.0
      %629 = vmatpush1.msra.mxu0 0.0
      %630 = vmatprep.subr.mxu0 0.0
      %631 = vmatpush1.msra.mxu0 0.0
      %632 = vmatprep.subr.mxu0 0.0
      %633 = vmatpush1.msra.mxu0 0.0
      %634 = vmatprep.subr.mxu0 0.0
      %635 = vmatpush1.msra.mxu0 0.0
      %636 = vmatprep.subr.mxu0 0.0
      %637 = vmatpush1.msra.mxu0 0.0
      %638 = vmatprep.subr.mxu0 0.0
      %639 = vmatpush1.msra.mxu0 0.0
      %640 = vmatprep.subr.mxu0 0.0
      %641 = vmatpush1.msra.mxu0 0.0
      %642 = vmatprep.subr.mxu0 0.0
      %643 = vmatpush1.msra.mxu0 0.0
      %644 = vmatprep.subr.mxu0 0.0
      %645 = vmatpush1.msra.mxu0 0.0
      %646 = vmatprep.subr.mxu0 0.0
      %647 = vmatpush1.msra.mxu0 0.0
      %648 = vmatprep.subr.mxu0 0.0
      %649 = vmatpush1.msra.mxu0 0.0
      %650 = vmatprep.subr.mxu0 0.0
      %651 = vmatpush1.msra.mxu0 0.0
      %652 = vmatprep.subr.mxu0 0.0
      %653 = vmatpush1.msra.mxu0 0.0
      %654 = vmatprep.subr.mxu0 0.0
      %655 = vmatpush1.msra.mxu0 0.0
      %656 = vmatprep.subr.mxu0 0.0
      %657 = vmatpush1.msra.mxu0 0.0
      %658 = vmatprep.subr.mxu0 0.0
      %659 = vmatpush1.msra.mxu0 0.0
      %660 = vmatprep.subr.mxu0 0.0
      %661 = vmatpush1.msra.mxu0 0.0
      %662 = vmatprep.subr.mxu0 0.0
      %663 = vmatpush1.msra.mxu0 0.0
      %664 = vmatprep.subr.mxu0 0.0
      %665 = vmatpush1.msra.mxu0 0.0
      %666 = vmatprep.subr.mxu0 0.0
      %667 = vmatpush1.msra.mxu0 0.0
      %668 = vmatprep.subr.mxu0 0.0
      %669 = vmatpush1.msra.mxu0 0.0
      %670 = vmatprep.subr.mxu0 0.0
      %671 = vmatpush1.msra.mxu0 0.0
      %672 = vmatprep.subr.mxu0 0.0
      %673 = vmatpush1.msra.mxu0 0.0
      %674 = vmatprep.subr.mxu0 0.0
      %675 = vmatpush1.msra.mxu0 0.0
      %676 = vmatprep.subr.mxu0 0.0
      %677 = vmatpush1.msra.mxu0 0.0
      %678 = vmatprep.mubr.f32.mxu0 0.0
      %679 = vmatmul.mubr.f32.gmra.mrb[0].mxu0 %v606
      %v680 = vpop.f32.mrb[0].mxu0
      %v681 = vadd.f32 0.0, %v680
      %v682 = vpop.f32.mrb[0].mxu0
      %v683 = vadd.f32 0.0, %v682
      %684 = vdwg.mxu0
      %v685 = vadd.f32 %v576, %v681
      %v686 = vadd.f32 %v577, %v683
      %s687 = scalar_lea.vmem %s1, 8
      %v688 = vld [vmem:[%s687] sm:$0x3]
      %v690 = vlaneseq
      %v691 = vshrl.u32 %v690, 7
      %v692 = vsub.s32 0, %v691
      %v693 = vrot.slane %v688, %v692
      %v694 = vlaneseq
      %v695 = vshrl.u32 %v694, 7
      %v696 = vsub.s32 1, %v695
      %v697 = vrot.slane %v688, %v696
      %v698 = vcombine.low %v693, %v697
      %v700 = vmul.f32 %v252, %v698
      %s701 = scalar_lea.vmem %s2, 32
      %v702 = vld [vmem:[%s701] sm:$0xff]
      %v704 = vcombine.high %v700, %v700
      %v706 = vsel %vm307, %v702, 0
      %v708 = vsel %vm311, %v700, 0
      %v710 = vsel %vm311, %v704, 0
      %712 = vmatprep.subr.mxu0 %v710
      %713 = vmatpush1.msra.mxu0 %v708
      %714 = vmatprep.subr.mxu0 0.0
      %715 = vmatpush1.msra.mxu0 0.0
      %716 = vmatprep.subr.mxu0 0.0
      %717 = vmatpush1.msra.mxu0 0.0
      %718 = vmatprep.subr.mxu0 0.0
      %719 = vmatpush1.msra.mxu0 0.0
      %720 = vmatprep.subr.mxu0 0.0
      %721 = vmatpush1.msra.mxu0 0.0
      %722 = vmatprep.subr.mxu0 0.0
      %723 = vmatpush1.msra.mxu0 0.0
      %724 = vmatprep.subr.mxu0 0.0
      %725 = vmatpush1.msra.mxu0 0.0
      %726 = vmatprep.subr.mxu0 0.0
      %727 = vmatpush1.msra.mxu0 0.0
      %728 = vmatprep.subr.mxu0 0.0
      %729 = vmatpush1.msra.mxu0 0.0
      %730 = vmatprep.subr.mxu0 0.0
      %731 = vmatpush1.msra.mxu0 0.0
      %732 = vmatprep.subr.mxu0 0.0
      %733 = vmatpush1.msra.mxu0 0.0
      %734 = vmatprep.subr.mxu0 0.0
      %735 = vmatpush1.msra.mxu0 0.0
      %736 = vmatprep.subr.mxu0 0.0
      %737 = vmatpush1.msra.mxu0 0.0
      %738 = vmatprep.subr.mxu0 0.0
      %739 = vmatpush1.msra.mxu0 0.0
      %740 = vmatprep.subr.mxu0 0.0
      %741 = vmatpush1.msra.mxu0 0.0
      %742 = vmatprep.subr.mxu0 0.0
      %743 = vmatpush1.msra.mxu0 0.0
      %744 = vmatprep.subr.mxu0 0.0
      %745 = vmatpush1.msra.mxu0 0.0
      %746 = vmatprep.subr.mxu0 0.0
      %747 = vmatpush1.msra.mxu0 0.0
      %748 = vmatprep.subr.mxu0 0.0
      %749 = vmatpush1.msra.mxu0 0.0
      %750 = vmatprep.subr.mxu0 0.0
      %751 = vmatpush1.msra.mxu0 0.0
      %752 = vmatprep.subr.mxu0 0.0
      %753 = vmatpush1.msra.mxu0 0.0
      %754 = vmatprep.subr.mxu0 0.0
      %755 = vmatpush1.msra.mxu0 0.0
      %756 = vmatprep.subr.mxu0 0.0
      %757 = vmatpush1.msra.mxu0 0.0
      %758 = vmatprep.subr.mxu0 0.0
      %759 = vmatpush1.msra.mxu0 0.0
      %760 = vmatprep.subr.mxu0 0.0
      %761 = vmatpush1.msra.mxu0 0.0
      %762 = vmatprep.subr.mxu0 0.0
      %763 = vmatpush1.msra.mxu0 0.0
      %764 = vmatprep.subr.mxu0 0.0
      %765 = vmatpush1.msra.mxu0 0.0
      %766 = vmatprep.subr.mxu0 0.0
      %767 = vmatpush1.msra.mxu0 0.0
      %768 = vmatprep.subr.mxu0 0.0
      %769 = vmatpush1.msra.mxu0 0.0
      %770 = vmatprep.subr.mxu0 0.0
      %771 = vmatpush1.msra.mxu0 0.0
      %772 = vmatprep.subr.mxu0 0.0
      %773 = vmatpush1.msra.mxu0 0.0
      %774 = vmatprep.subr.mxu0 0.0
      %775 = vmatpush1.msra.mxu0 0.0
      %776 = vmatprep.mubr.f32.mxu0 0.0
      %777 = vmatmul.mubr.f32.gmra.mrb[0].mxu0 %v706
      %v778 = vpop.f32.mrb[0].mxu0
      %v779 = vadd.f32 0.0, %v778
      %v780 = vpop.f32.mrb[0].mxu0
      %v781 = vadd.f32 0.0, %v780
      %782 = vdwg.mxu0
      %v783 = vadd.f32 %v685, %v779
      %v784 = vadd.f32 %v686, %v781
      %785 = vrot.lane.b32.xlu0 %v252, 127
      %v786 = vpop.permute.xlu0 %785
      %787 = vrot.lane.b32.xlu0 %v254, 127
      %v788 = vpop.permute.xlu0 %787
      %vm789 = vcmask 1039360
      %v790 = vsel %vm789, %v786, %v788
      %v794 = vsel %vm789, %v788, %v786
      %s795 = scalar_lea.vmem %s1, 10
      %v796 = vld [vmem:[%s795] sm:$0x3]
      %v798 = vlaneseq
      %v799 = vshrl.u32 %v798, 7
      %v800 = vsub.s32 0, %v799
      %v801 = vrot.slane %v796, %v800
      %v802 = vlaneseq
      %v803 = vshrl.u32 %v802, 7
      %v804 = vsub.s32 1, %v803
      %v805 = vrot.slane %v796, %v804
      %v808 = vmul.f32 %v790, %v801
      %v809 = vmul.f32 %v794, %v805
      %s810 = scalar_lea.vmem %s2, 40
      %v811 = vld [vmem:[%s810] sm:$0xff]
      %v813 = vsel %vm307, %v811, 0
      %v816 = vsel %vm311, %v808, 0
      %v819 = vsel %vm311, %v809, 0
      %821 = vmatprep.subr.mxu0 %v819
      %822 = vmatpush1.msra.mxu0 %v816
      %823 = vmatprep.subr.mxu0 0.0
      %824 = vmatpush1.msra.mxu0 0.0
      %825 = vmatprep.subr.mxu0 0.0
      %826 = vmatpush1.msra.mxu0 0.0
      %827 = vmatprep.subr.mxu0 0.0
      %828 = vmatpush1.msra.mxu0 0.0
      %829 = vmatprep.subr.mxu0 0.0
      %830 = vmatpush1.msra.mxu0 0.0
      %831 = vmatprep.subr.mxu0 0.0
      %832 = vmatpush1.msra.mxu0 0.0
      %833 = vmatprep.subr.mxu0 0.0
      %834 = vmatpush1.msra.mxu0 0.0
      %835 = vmatprep.subr.mxu0 0.0
      %836 = vmatpush1.msra.mxu0 0.0
      %837 = vmatprep.subr.mxu0 0.0
      %838 = vmatpush1.msra.mxu0 0.0
      %839 = vmatprep.subr.mxu0 0.0
      %840 = vmatpush1.msra.mxu0 0.0
      %841 = vmatprep.subr.mxu0 0.0
      %842 = vmatpush1.msra.mxu0 0.0
      %843 = vmatprep.subr.mxu0 0.0
      %844 = vmatpush1.msra.mxu0 0.0
      %845 = vmatprep.subr.mxu0 0.0
      %846 = vmatpush1.msra.mxu0 0.0
      %847 = vmatprep.subr.mxu0 0.0
      %848 = vmatpush1.msra.mxu0 0.0
      %849 = vmatprep.subr.mxu0 0.0
      %850 = vmatpush1.msra.mxu0 0.0
      %851 = vmatprep.subr.mxu0 0.0
      %852 = vmatpush1.msra.mxu0 0.0
      %853 = vmatprep.subr.mxu0 0.0
      %854 = vmatpush1.msra.mxu0 0.0
      %855 = vmatprep.subr.mxu0 0.0
      %856 = vmatpush1.msra.mxu0 0.0
      %857 = vmatprep.subr.mxu0 0.0
      %858 = vmatpush1.msra.mxu0 0.0
      %859 = vmatprep.subr.mxu0 0.0
      %860 = vmatpush1.msra.mxu0 0.0
      %861 = vmatprep.subr.mxu0 0.0
      %862 = vmatpush1.msra.mxu0 0.0
      %863 = vmatprep.subr.mxu0 0.0
      %864 = vmatpush1.msra.mxu0 0.0
      %865 = vmatprep.subr.mxu0 0.0
      %866 = vmatpush1.msra.mxu0 0.0
      %867 = vmatprep.subr.mxu0 0.0
      %868 = vmatpush1.msra.mxu0 0.0
      %869 = vmatprep.subr.mxu0 0.0
      %870 = vmatpush1.msra.mxu0 0.0
      %871 = vmatprep.subr.mxu0 0.0
      %872 = vmatpush1.msra.mxu0 0.0
      %873 = vmatprep.subr.mxu0 0.0
      %874 = vmatpush1.msra.mxu0 0.0
      %875 = vmatprep.subr.mxu0 0.0
      %876 = vmatpush1.msra.mxu0 0.0
      %877 = vmatprep.subr.mxu0 0.0
      %878 = vmatpush1.msra.mxu0 0.0
      %879 = vmatprep.subr.mxu0 0.0
      %880 = vmatpush1.msra.mxu0 0.0
      %881 = vmatprep.subr.mxu0 0.0
      %882 = vmatpush1.msra.mxu0 0.0
      %883 = vmatprep.subr.mxu0 0.0
      %884 = vmatpush1.msra.mxu0 0.0
      %885 = vmatprep.mubr.f32.mxu0 0.0
      %886 = vmatmul.mubr.f32.gmra.mrb[0].mxu0 %v813
      %v887 = vpop.f32.mrb[0].mxu0
      %v888 = vadd.f32 0.0, %v887
      %v889 = vpop.f32.mrb[0].mxu0
      %v890 = vadd.f32 0.0, %v889
      %891 = vdwg.mxu0
      %v892 = vadd.f32 %v783, %v888
      %v893 = vadd.f32 %v784, %v890
      %894 = vrot.lane.b32.xlu0 %v252, 113
      %v895 = vpop.permute.xlu0 %894
      %896 = vrot.lane.b32.xlu0 %v254, 113
      %v897 = vpop.permute.xlu0 %896
      %vm898 = vcmask 924672
      %v899 = vsel %vm898, %v895, %v897
      %v903 = vsel %vm898, %v897, %v895
      %s904 = scalar_lea.vmem %s1, 12
      %v905 = vld [vmem:[%s904] sm:$0x3]
      %v907 = vlaneseq
      %v908 = vshrl.u32 %v907, 7
      %v909 = vsub.s32 0, %v908
      %v910 = vrot.slane %v905, %v909
      %v911 = vlaneseq
      %v912 = vshrl.u32 %v911, 7
      %v913 = vsub.s32 1, %v912
      %v914 = vrot.slane %v905, %v913
      %v917 = vmul.f32 %v899, %v910
      %v918 = vmul.f32 %v903, %v914
      %s919 = scalar_lea.vmem %s2, 48
      %v920 = vld [vmem:[%s919] sm:$0xff]
      %v922 = vsel %vm307, %v920, 0
      %v925 = vsel %vm311, %v917, 0
      %v928 = vsel %vm311, %v918, 0
      %930 = vmatprep.subr.mxu0 %v928
      %931 = vmatpush1.msra.mxu0 %v925
      %932 = vmatprep.subr.mxu0 0.0
      %933 = vmatpush1.msra.mxu0 0.0
      %934 = vmatprep.subr.mxu0 0.0
      %935 = vmatpush1.msra.mxu0 0.0
      %936 = vmatprep.subr.mxu0 0.0
      %937 = vmatpush1.msra.mxu0 0.0
      %938 = vmatprep.subr.mxu0 0.0
      %939 = vmatpush1.msra.mxu0 0.0
      %940 = vmatprep.subr.mxu0 0.0
      %941 = vmatpush1.msra.mxu0 0.0
      %942 = vmatprep.subr.mxu0 0.0
      %943 = vmatpush1.msra.mxu0 0.0
      %944 = vmatprep.subr.mxu0 0.0
      %945 = vmatpush1.msra.mxu0 0.0
      %946 = vmatprep.subr.mxu0 0.0
      %947 = vmatpush1.msra.mxu0 0.0
      %948 = vmatprep.subr.mxu0 0.0
      %949 = vmatpush1.msra.mxu0 0.0
      %950 = vmatprep.subr.mxu0 0.0
      %951 = vmatpush1.msra.mxu0 0.0
      %952 = vmatprep.subr.mxu0 0.0
      %953 = vmatpush1.msra.mxu0 0.0
      %954 = vmatprep.subr.mxu0 0.0
      %955 = vmatpush1.msra.mxu0 0.0
      %956 = vmatprep.subr.mxu0 0.0
      %957 = vmatpush1.msra.mxu0 0.0
      %958 = vmatprep.subr.mxu0 0.0
      %959 = vmatpush1.msra.mxu0 0.0
      %960 = vmatprep.subr.mxu0 0.0
      %961 = vmatpush1.msra.mxu0 0.0
      %962 = vmatprep.subr.mxu0 0.0
      %963 = vmatpush1.msra.mxu0 0.0
      %964 = vmatprep.subr.mxu0 0.0
      %965 = vmatpush1.msra.mxu0 0.0
      %966 = vmatprep.subr.mxu0 0.0
      %967 = vmatpush1.msra.mxu0 0.0
      %968 = vmatprep.subr.mxu0 0.0
      %969 = vmatpush1.msra.mxu0 0.0
      %970 = vmatprep.subr.mxu0 0.0
      %971 = vmatpush1.msra.mxu0 0.0
      %972 = vmatprep.subr.mxu0 0.0
      %973 = vmatpush1.msra.mxu0 0.0
      %974 = vmatprep.subr.mxu0 0.0
      %975 = vmatpush1.msra.mxu0 0.0
      %976 = vmatprep.subr.mxu0 0.0
      %977 = vmatpush1.msra.mxu0 0.0
      %978 = vmatprep.subr.mxu0 0.0
      %979 = vmatpush1.msra.mxu0 0.0
      %980 = vmatprep.subr.mxu0 0.0
      %981 = vmatpush1.msra.mxu0 0.0
      %982 = vmatprep.subr.mxu0 0.0
      %983 = vmatpush1.msra.mxu0 0.0
      %984 = vmatprep.subr.mxu0 0.0
      %985 = vmatpush1.msra.mxu0 0.0
      %986 = vmatprep.subr.mxu0 0.0
      %987 = vmatpush1.msra.mxu0 0.0
      %988 = vmatprep.subr.mxu0 0.0
      %989 = vmatpush1.msra.mxu0 0.0
      %990 = vmatprep.subr.mxu0 0.0
      %991 = vmatpush1.msra.mxu0 0.0
      %992 = vmatprep.subr.mxu0 0.0
      %993 = vmatpush1.msra.mxu0 0.0
      %994 = vmatprep.mubr.f32.mxu0 0.0
      %995 = vmatmul.mubr.f32.gmra.mrb[0].mxu0 %v922
      %v996 = vpop.f32.mrb[0].mxu0
      %v997 = vadd.f32 0.0, %v996
      %v998 = vpop.f32.mrb[0].mxu0
      %v999 = vadd.f32 0.0, %v998
      %1000 = vdwg.mxu0
      %v1001 = vadd.f32 %v892, %v997
      %v1002 = vadd.f32 %v893, %v999
      %1003 = vrot.lane.b32.xlu0 %v252, 112
      %v1004 = vpop.permute.xlu0 %1003
      %1005 = vrot.lane.b32.xlu0 %v254, 112
      %v1006 = vpop.permute.xlu0 %1005
      %vm1007 = vcmask 916480
      %v1008 = vsel %vm1007, %v1004, %v1006
      %v1012 = vsel %vm1007, %v1006, %v1004
      %s1013 = scalar_lea.vmem %s1, 14
      %v1014 = vld [vmem:[%s1013] sm:$0x3]
      %v1016 = vlaneseq
      %v1017 = vshrl.u32 %v1016, 7
      %v1018 = vsub.s32 0, %v1017
      %v1019 = vrot.slane %v1014, %v1018
      %v1020 = vlaneseq
      %v1021 = vshrl.u32 %v1020, 7
      %v1022 = vsub.s32 1, %v1021
      %v1023 = vrot.slane %v1014, %v1022
      %v1026 = vmul.f32 %v1008, %v1019
      %v1027 = vmul.f32 %v1012, %v1023
      %s1028 = scalar_lea.vmem %s2, 56
      %v1029 = vld [vmem:[%s1028] sm:$0xff]
      %v1031 = vsel %vm307, %v1029, 0
      %v1034 = vsel %vm311, %v1026, 0
      %v1037 = vsel %vm311, %v1027, 0
      %1039 = vmatprep.subr.mxu0 %v1037
      %1040 = vmatpush1.msra.mxu0 %v1034
      %1041 = vmatprep.subr.mxu0 0.0
      %1042 = vmatpush1.msra.mxu0 0.0
      %1043 = vmatprep.subr.mxu0 0.0
      %1044 = vmatpush1.msra.mxu0 0.0
      %1045 = vmatprep.subr.mxu0 0.0
      %1046 = vmatpush1.msra.mxu0 0.0
      %1047 = vmatprep.subr.mxu0 0.0
      %1048 = vmatpush1.msra.mxu0 0.0
      %1049 = vmatprep.subr.mxu0 0.0
      %1050 = vmatpush1.msra.mxu0 0.0
      %1051 = vmatprep.subr.mxu0 0.0
      %1052 = vmatpush1.msra.mxu0 0.0
      %1053 = vmatprep.subr.mxu0 0.0
      %1054 = vmatpush1.msra.mxu0 0.0
      %1055 = vmatprep.subr.mxu0 0.0
      %1056 = vmatpush1.msra.mxu0 0.0
      %1057 = vmatprep.subr.mxu0 0.0
      %1058 = vmatpush1.msra.mxu0 0.0
      %1059 = vmatprep.subr.mxu0 0.0
      %1060 = vmatpush1.msra.mxu0 0.0
      %1061 = vmatprep.subr.mxu0 0.0
      %1062 = vmatpush1.msra.mxu0 0.0
      %1063 = vmatprep.subr.mxu0 0.0
      %1064 = vmatpush1.msra.mxu0 0.0
      %1065 = vmatprep.subr.mxu0 0.0
      %1066 = vmatpush1.msra.mxu0 0.0
      %1067 = vmatprep.subr.mxu0 0.0
      %1068 = vmatpush1.msra.mxu0 0.0
      %1069 = vmatprep.subr.mxu0 0.0
      %1070 = vmatpush1.msra.mxu0 0.0
      %1071 = vmatprep.subr.mxu0 0.0
      %1072 = vmatpush1.msra.mxu0 0.0
      %1073 = vmatprep.subr.mxu0 0.0
      %1074 = vmatpush1.msra.mxu0 0.0
      %1075 = vmatprep.subr.mxu0 0.0
      %1076 = vmatpush1.msra.mxu0 0.0
      %1077 = vmatprep.subr.mxu0 0.0
      %1078 = vmatpush1.msra.mxu0 0.0
      %1079 = vmatprep.subr.mxu0 0.0
      %1080 = vmatpush1.msra.mxu0 0.0
      %1081 = vmatprep.subr.mxu0 0.0
      %1082 = vmatpush1.msra.mxu0 0.0
      %1083 = vmatprep.subr.mxu0 0.0
      %1084 = vmatpush1.msra.mxu0 0.0
      %1085 = vmatprep.subr.mxu0 0.0
      %1086 = vmatpush1.msra.mxu0 0.0
      %1087 = vmatprep.subr.mxu0 0.0
      %1088 = vmatpush1.msra.mxu0 0.0
      %1089 = vmatprep.subr.mxu0 0.0
      %1090 = vmatpush1.msra.mxu0 0.0
      %1091 = vmatprep.subr.mxu0 0.0
      %1092 = vmatpush1.msra.mxu0 0.0
      %1093 = vmatprep.subr.mxu0 0.0
      %1094 = vmatpush1.msra.mxu0 0.0
      %1095 = vmatprep.subr.mxu0 0.0
      %1096 = vmatpush1.msra.mxu0 0.0
      %1097 = vmatprep.subr.mxu0 0.0
      %1098 = vmatpush1.msra.mxu0 0.0
      %1099 = vmatprep.subr.mxu0 0.0
      %1100 = vmatpush1.msra.mxu0 0.0
      %1101 = vmatprep.subr.mxu0 0.0
      %1102 = vmatpush1.msra.mxu0 0.0
      %1103 = vmatprep.mubr.f32.mxu0 0.0
      %1104 = vmatmul.mubr.f32.gmra.mrb[0].mxu0 %v1031
      %v1105 = vpop.f32.mrb[0].mxu0
      %v1106 = vadd.f32 0.0, %v1105
      %v1107 = vpop.f32.mrb[0].mxu0
      %v1108 = vadd.f32 0.0, %v1107
      %1109 = vdwg.mxu0
      %v1110 = vadd.f32 %v1001, %v1106
      %v1111 = vadd.f32 %v1002, %v1108
      %1112 = vrot.lane.b32.xlu0 %v252, 111
      %v1113 = vpop.permute.xlu0 %1112
      %1114 = vrot.lane.b32.xlu0 %v254, 111
      %v1115 = vpop.permute.xlu0 %1114
      %vm1116 = vcmask 908288
      %v1117 = vsel %vm1116, %v1113, %v1115
      %v1121 = vsel %vm1116, %v1115, %v1113
      %s1122 = scalar_lea.vmem %s1, 16
      %v1123 = vld [vmem:[%s1122] sm:$0x3]
      %v1125 = vlaneseq
      %v1126 = vshrl.u32 %v1125, 7
      %v1127 = vsub.s32 0, %v1126
      %v1128 = vrot.slane %v1123, %v1127
      %v1129 = vlaneseq
      %v1130 = vshrl.u32 %v1129, 7
      %v1131 = vsub.s32 1, %v1130
      %v1132 = vrot.slane %v1123, %v1131
      %v1135 = vmul.f32 %v1117, %v1128
      %v1136 = vmul.f32 %v1121, %v1132
      %s1137 = scalar_lea.vmem %s2, 64
      %v1138 = vld [vmem:[%s1137] sm:$0xff]
      %v1140 = vsel %vm307, %v1138, 0
      %v1143 = vsel %vm311, %v1135, 0
      %v1146 = vsel %vm311, %v1136, 0
      %1148 = vmatprep.subr.mxu0 %v1146
      %1149 = vmatpush1.msra.mxu0 %v1143
      %1150 = vmatprep.subr.mxu0 0.0
      %1151 = vmatpush1.msra.mxu0 0.0
      %1152 = vmatprep.subr.mxu0 0.0
      %1153 = vmatpush1.msra.mxu0 0.0
      %1154 = vmatprep.subr.mxu0 0.0
      %1155 = vmatpush1.msra.mxu0 0.0
      %1156 = vmatprep.subr.mxu0 0.0
      %1157 = vmatpush1.msra.mxu0 0.0
      %1158 = vmatprep.subr.mxu0 0.0
      %1159 = vmatpush1.msra.mxu0 0.0
      %1160 = vmatprep.subr.mxu0 0.0
      %1161 = vmatpush1.msra.mxu0 0.0
      %1162 = vmatprep.subr.mxu0 0.0
      %1163 = vmatpush1.msra.mxu0 0.0
      %1164 = vmatprep.subr.mxu0 0.0
      %1165 = vmatpush1.msra.mxu0 0.0
      %1166 = vmatprep.subr.mxu0 0.0
      %1167 = vmatpush1.msra.mxu0 0.0
      %1168 = vmatprep.subr.mxu0 0.0
      %1169 = vmatpush1.msra.mxu0 0.0
      %1170 = vmatprep.subr.mxu0 0.0
      %1171 = vmatpush1.msra.mxu0 0.0
      %1172 = vmatprep.subr.mxu0 0.0
      %1173 = vmatpush1.msra.mxu0 0.0
      %1174 = vmatprep.subr.mxu0 0.0
      %1175 = vmatpush1.msra.mxu0 0.0
      %1176 = vmatprep.subr.mxu0 0.0
      %1177 = vmatpush1.msra.mxu0 0.0
      %1178 = vmatprep.subr.mxu0 0.0
      %1179 = vmatpush1.msra.mxu0 0.0
      %1180 = vmatprep.subr.mxu0 0.0
      %1181 = vmatpush1.msra.mxu0 0.0
      %1182 = vmatprep.subr.mxu0 0.0
      %1183 = vmatpush1.msra.mxu0 0.0
      %1184 = vmatprep.subr.mxu0 0.0
      %1185 = vmatpush1.msra.mxu0 0.0
      %1186 = vmatprep.subr.mxu0 0.0
      %1187 = vmatpush1.msra.mxu0 0.0
      %1188 = vmatprep.subr.mxu0 0.0
      %1189 = vmatpush1.msra.mxu0 0.0
      %1190 = vmatprep.subr.mxu0 0.0
      %1191 = vmatpush1.msra.mxu0 0.0
      %1192 = vmatprep.subr.mxu0 0.0
      %1193 = vmatpush1.msra.mxu0 0.0
      %1194 = vmatprep.subr.mxu0 0.0
      %1195 = vmatpush1.msra.mxu0 0.0
      %1196 = vmatprep.subr.mxu0 0.0
      %1197 = vmatpush1.msra.mxu0 0.0
      %1198 = vmatprep.subr.mxu0 0.0
      %1199 = vmatpush1.msra.mxu0 0.0
      %1200 = vmatprep.subr.mxu0 0.0
      %1201 = vmatpush1.msra.mxu0 0.0
      %1202 = vmatprep.subr.mxu0 0.0
      %1203 = vmatpush1.msra.mxu0 0.0
      %1204 = vmatprep.subr.mxu0 0.0
      %1205 = vmatpush1.msra.mxu0 0.0
      %1206 = vmatprep.subr.mxu0 0.0
      %1207 = vmatpush1.msra.mxu0 0.0
      %1208 = vmatprep.subr.mxu0 0.0
      %1209 = vmatpush1.msra.mxu0 0.0
      %1210 = vmatprep.subr.mxu0 0.0
      %1211 = vmatpush1.msra.mxu0 0.0
      %1212 = vmatprep.mubr.f32.mxu0 0.0
      %1213 = vmatmul.mubr.f32.gmra.mrb[0].mxu0 %v1140
      %v1214 = vpop.f32.mrb[0].mxu0
      %v1215 = vadd.f32 0.0, %v1214
      %v1216 = vpop.f32.mrb[0].mxu0
      %v1217 = vadd.f32 0.0, %v1216
      %1218 = vdwg.mxu0
      %v1219 = vadd.f32 %v1110, %v1215
      %v1220 = vadd.f32 %v1111, %v1217
      %v1221 = vld [vmem:[%s3] sm:$0xff]
      %1223 = vset.pattern.permute.xlu0 0
      %1224 = vperm.xlu0 %1223, %v1221
      %v1225 = vpop.permute.xlu0 %1224
      %v1227 = vadd.f32 %v1219, %v1225
      %v1228 = vadd.f32 %v1220, %v1225
      %v1229 = vmax.f32 %v1227, 0.0
      %v1230 = vmax.f32 %v1228, 0.0
      %1232 = vrot.lane.b32.xlu0 %v1230, 17
      %v1233 = vpop.permute.xlu0 %1232
      %1236 = vrot.lane.b32.xlu0 %v1229, 17
      %v1237 = vpop.permute.xlu0 %1236
      %v1238 = vsel %vm260, %v1237, %v1233
      %v1241 = vsel %vm260, %v1233, %v1237
      %v1242 = vmul.f32 %v1241, %v270
      %v1243 = vmul.f32 %v1238, %v274
      %v1244 = vld [vmem:[%s4] sm:$0xf]
      %1245 = vrot.lane.b32.xlu0 %v1230, 16
      %v1246 = vpop.permute.xlu0 %1245
      %1248 = vrot.lane.b32.xlu0 %v1229, 16
      %v1249 = vpop.permute.xlu0 %1248
      %v1250 = vsel %vm285, %v1249, %v1246
      %v1253 = vsel %vm285, %v1246, %v1249
      %v1254 = vmul.f32 %v1253, %v296
      %v1255 = vmul.f32 %v1250, %v300
      %s1256 = scalar_lea.vmem %s4, 4
      %v1257 = vld [vmem:[%s1256] sm:$0xf]
      %vm1258 = vcmask 64512
      %v1260 = vsel %vm1258, %v1257, 0
      %1262 = vmatprep.subr.mxu0 %v1255
      %1263 = vmatpush1.msra.mxu0 %v1254
      %1264 = vmatprep.subr.mxu0 0.0
      %1265 = vmatpush1.msra.mxu0 0.0
      %1266 = vmatprep.subr.mxu0 0.0
      %1267 = vmatpush1.msra.mxu0 0.0
      %1268 = vmatprep.subr.mxu0 0.0
      %1269 = vmatpush1.msra.mxu0 0.0
      %1270 = vmatprep.subr.mxu0 0.0
      %1271 = vmatpush1.msra.mxu0 0.0
      %1272 = vmatprep.subr.mxu0 0.0
      %1273 = vmatpush1.msra.mxu0 0.0
      %1274 = vmatprep.subr.mxu0 0.0
      %1275 = vmatpush1.msra.mxu0 0.0
      %1276 = vmatprep.subr.mxu0 0.0
      %1277 = vmatpush1.msra.mxu0 0.0
      %1278 = vmatprep.subr.mxu0 0.0
      %1279 = vmatpush1.msra.mxu0 0.0
      %1280 = vmatprep.subr.mxu0 0.0
      %1281 = vmatpush1.msra.mxu0 0.0
      %1282 = vmatprep.subr.mxu0 0.0
      %1283 = vmatpush1.msra.mxu0 0.0
      %1284 = vmatprep.subr.mxu0 0.0
      %1285 = vmatpush1.msra.mxu0 0.0
      %1286 = vmatprep.subr.mxu0 0.0
      %1287 = vmatpush1.msra.mxu0 0.0
      %1288 = vmatprep.subr.mxu0 0.0
      %1289 = vmatpush1.msra.mxu0 0.0
      %1290 = vmatprep.subr.mxu0 0.0
      %1291 = vmatpush1.msra.mxu0 0.0
      %1292 = vmatprep.subr.mxu0 0.0
      %1293 = vmatpush1.msra.mxu0 0.0
      %1294 = vmatprep.subr.mxu0 0.0
      %1295 = vmatpush1.msra.mxu0 0.0
      %1296 = vmatprep.subr.mxu0 0.0
      %1297 = vmatpush1.msra.mxu0 0.0
      %1298 = vmatprep.subr.mxu0 0.0
      %1299 = vmatpush1.msra.mxu0 0.0
      %1300 = vmatprep.subr.mxu0 0.0
      %1301 = vmatpush1.msra.mxu0 0.0
      %1302 = vmatprep.subr.mxu0 0.0
      %1303 = vmatpush1.msra.mxu0 0.0
      %1304 = vmatprep.subr.mxu0 0.0
      %1305 = vmatpush1.msra.mxu0 0.0
      %1306 = vmatprep.subr.mxu0 0.0
      %1307 = vmatpush1.msra.mxu0 0.0
      %1308 = vmatprep.subr.mxu0 0.0
      %1309 = vmatpush1.msra.mxu0 0.0
      %1310 = vmatprep.subr.mxu0 0.0
      %1311 = vmatpush1.msra.mxu0 0.0
      %1312 = vmatprep.subr.mxu0 0.0
      %1313 = vmatpush1.msra.mxu0 0.0
      %1314 = vmatprep.subr.mxu0 0.0
      %1315 = vmatpush1.msra.mxu0 0.0
      %1316 = vmatprep.subr.mxu0 0.0
      %1317 = vmatpush1.msra.mxu0 0.0
      %1318 = vmatprep.subr.mxu0 0.0
      %1319 = vmatpush1.msra.mxu0 0.0
      %1320 = vmatprep.subr.mxu0 0.0
      %1321 = vmatpush1.msra.mxu0 0.0
      %1322 = vmatprep.subr.mxu0 0.0
      %1323 = vmatpush1.msra.mxu0 0.0
      %1324 = vmatprep.subr.mxu0 0.0
      %1325 = vmatpush1.msra.mxu0 0.0
      %1326 = vmatprep.mubr.f32.mxu0 0.0
      %1327 = vmatmul.mubr.f32.gmra.mrb[0].mxu0 %v1260
      %v1328 = vpop.f32.mrb[0].mxu0
      %v1329 = vadd.f32 0.0, %v1328
      %v1330 = vpop.f32.mrb[0].mxu0
      %v1331 = vadd.f32 0.0, %v1330
      %1332 = vdwg.mxu0
      %v1334 = vsel %vm1258, %v1244, 0
      %1336 = vmatprep.subr.mxu0 %v1243
      %1337 = vmatpush1.msra.mxu0 %v1242
      %1338 = vmatprep.subr.mxu0 0.0
      %1339 = vmatpush1.msra.mxu0 0.0
      %1340 = vmatprep.subr.mxu0 0.0
      %1341 = vmatpush1.msra.mxu0 0.0
      %1342 = vmatprep.subr.mxu0 0.0
      %1343 = vmatpush1.msra.mxu0 0.0
      %1344 = vmatprep.subr.mxu0 0.0
      %1345 = vmatpush1.msra.mxu0 0.0
      %1346 = vmatprep.subr.mxu0 0.0
      %1347 = vmatpush1.msra.mxu0 0.0
      %1348 = vmatprep.subr.mxu0 0.0
      %1349 = vmatpush1.msra.mxu0 0.0
      %1350 = vmatprep.subr.mxu0 0.0
      %1351 = vmatpush1.msra.mxu0 0.0
      %1352 = vmatprep.subr.mxu0 0.0
      %1353 = vmatpush1.msra.mxu0 0.0
      %1354 = vmatprep.subr.mxu0 0.0
      %1355 = vmatpush1.msra.mxu0 0.0
      %1356 = vmatprep.subr.mxu0 0.0
      %1357 = vmatpush1.msra.mxu0 0.0
      %1358 = vmatprep.subr.mxu0 0.0
      %1359 = vmatpush1.msra.mxu0 0.0
      %1360 = vmatprep.subr.mxu0 0.0
      %1361 = vmatpush1.msra.mxu0 0.0
      %1362 = vmatprep.subr.mxu0 0.0
      %1363 = vmatpush1.msra.mxu0 0.0
      %1364 = vmatprep.subr.mxu0 0.0
      %1365 = vmatpush1.msra.mxu0 0.0
      %1366 = vmatprep.subr.mxu0 0.0
      %1367 = vmatpush1.msra.mxu0 0.0
      %1368 = vmatprep.subr.mxu0 0.0
      %1369 = vmatpush1.msra.mxu0 0.0
      %1370 = vmatprep.subr.mxu0 0.0
      %1371 = vmatpush1.msra.mxu0 0.0
      %1372 = vmatprep.subr.mxu0 0.0
      %1373 = vmatpush1.msra.mxu0 0.0
      %1374 = vmatprep.subr.mxu0 0.0
      %1375 = vmatpush1.msra.mxu0 0.0
      %1376 = vmatprep.subr.mxu0 0.0
      %1377 = vmatpush1.msra.mxu0 0.0
      %1378 = vmatprep.subr.mxu0 0.0
      %1379 = vmatpush1.msra.mxu0 0.0
      %1380 = vmatprep.subr.mxu0 0.0
      %1381 = vmatpush1.msra.mxu0 0.0
      %1382 = vmatprep.subr.mxu0 0.0
      %1383 = vmatpush1.msra.mxu0 0.0
      %1384 = vmatprep.subr.mxu0 0.0
      %1385 = vmatpush1.msra.mxu0 0.0
      %1386 = vmatprep.subr.mxu0 0.0
      %1387 = vmatpush1.msra.mxu0 0.0
      %1388 = vmatprep.subr.mxu0 0.0
      %1389 = vmatpush1.msra.mxu0 0.0
      %1390 = vmatprep.subr.mxu0 0.0
      %1391 = vmatpush1.msra.mxu0 0.0
      %1392 = vmatprep.subr.mxu0 0.0
      %1393 = vmatpush1.msra.mxu0 0.0
      %1394 = vmatprep.subr.mxu0 0.0
      %1395 = vmatpush1.msra.mxu0 0.0
      %1396 = vmatprep.subr.mxu0 0.0
      %1397 = vmatpush1.msra.mxu0 0.0
      %1398 = vmatprep.subr.mxu0 0.0
      %1399 = vmatpush1.msra.mxu0 0.0
      %1400 = vmatprep.mubr.f32.mxu0 0.0
      %1401 = vmatmul.mubr.f32.gmra.mrb[0].mxu0 %v1334
      %v1402 = vpop.f32.mrb[0].mxu0
      %v1403 = vadd.f32 %v1329, %v1402
      %v1404 = vpop.f32.mrb[0].mxu0
      %v1405 = vadd.f32 %v1331, %v1404
      %1406 = vdwg.mxu0
      %1407 = vrot.lane.b32.xlu0 %v1230, 15
      %v1408 = vpop.permute.xlu0 %1407
      %1410 = vrot.lane.b32.xlu0 %v1229, 15
      %v1411 = vpop.permute.xlu0 %1410
      %v1412 = vsel %vm474, %v1411, %v1408
      %v1415 = vsel %vm474, %v1408, %v1411
      %v1416 = vmul.f32 %v1415, %v485
      %v1417 = vmul.f32 %v1412, %v489
      %s1418 = scalar_lea.vmem %s4, 8
      %v1419 = vld [vmem:[%s1418] sm:$0xf]
      %v1421 = vsel %vm1258, %v1419, 0
      %1423 = vmatprep.subr.mxu0 %v1417
      %1424 = vmatpush1.msra.mxu0 %v1416
      %1425 = vmatprep.subr.mxu0 0.0
      %1426 = vmatpush1.msra.mxu0 0.0
      %1427 = vmatprep.subr.mxu0 0.0
      %1428 = vmatpush1.msra.mxu0 0.0
      %1429 = vmatprep.subr.mxu0 0.0
      %1430 = vmatpush1.msra.mxu0 0.0
      %1431 = vmatprep.subr.mxu0 0.0
      %1432 = vmatpush1.msra.mxu0 0.0
      %1433 = vmatprep.subr.mxu0 0.0
      %1434 = vmatpush1.msra.mxu0 0.0
      %1435 = vmatprep.subr.mxu0 0.0
      %1436 = vmatpush1.msra.mxu0 0.0
      %1437 = vmatprep.subr.mxu0 0.0
      %1438 = vmatpush1.msra.mxu0 0.0
      %1439 = vmatprep.subr.mxu0 0.0
      %1440 = vmatpush1.msra.mxu0 0.0
      %1441 = vmatprep.subr.mxu0 0.0
      %1442 = vmatpush1.msra.mxu0 0.0
      %1443 = vmatprep.subr.mxu0 0.0
      %1444 = vmatpush1.msra.mxu0 0.0
      %1445 = vmatprep.subr.mxu0 0.0
      %1446 = vmatpush1.msra.mxu0 0.0
      %1447 = vmatprep.subr.mxu0 0.0
      %1448 = vmatpush1.msra.mxu0 0.0
      %1449 = vmatprep.subr.mxu0 0.0
      %1450 = vmatpush1.msra.mxu0 0.0
      %1451 = vmatprep.subr.mxu0 0.0
      %1452 = vmatpush1.msra.mxu0 0.0
      %1453 = vmatprep.subr.mxu0 0.0
      %1454 = vmatpush1.msra.mxu0 0.0
      %1455 = vmatprep.subr.mxu0 0.0
      %1456 = vmatpush1.msra.mxu0 0.0
      %1457 = vmatprep.subr.mxu0 0.0
      %1458 = vmatpush1.msra.mxu0 0.0
      %1459 = vmatprep.subr.mxu0 0.0
      %1460 = vmatpush1.msra.mxu0 0.0
      %1461 = vmatprep.subr.mxu0 0.0
      %1462 = vmatpush1.msra.mxu0 0.0
      %1463 = vmatprep.subr.mxu0 0.0
      %1464 = vmatpush1.msra.mxu0 0.0
      %1465 = vmatprep.subr.mxu0 0.0
      %1466 = vmatpush1.msra.mxu0 0.0
      %1467 = vmatprep.subr.mxu0 0.0
      %1468 = vmatpush1.msra.mxu0 0.0
      %1469 = vmatprep.subr.mxu0 0.0
      %1470 = vmatpush1.msra.mxu0 0.0
      %1471 = vmatprep.subr.mxu0 0.0
      %1472 = vmatpush1.msra.mxu0 0.0
      %1473 = vmatprep.subr.mxu0 0.0
      %1474 = vmatpush1.msra.mxu0 0.0
      %1475 = vmatprep.subr.mxu0 0.0
      %1476 = vmatpush1.msra.mxu0 0.0
      %1477 = vmatprep.subr.mxu0 0.0
      %1478 = vmatpush1.msra.mxu0 0.0
      %1479 = vmatprep.subr.mxu0 0.0
      %1480 = vmatpush1.msra.mxu0 0.0
      %1481 = vmatprep.subr.mxu0 0.0
      %1482 = vmatpush1.msra.mxu0 0.0
      %1483 = vmatprep.subr.mxu0 0.0
      %1484 = vmatpush1.msra.mxu0 0.0
      %1485 = vmatprep.subr.mxu0 0.0
      %1486 = vmatpush1.msra.mxu0 0.0
      %1487 = vmatprep.mubr.f32.mxu0 0.0
      %1488 = vmatmul.mubr.f32.gmra.mrb[0].mxu0 %v1421
      %v1489 = vpop.f32.mrb[0].mxu0
      %v1490 = vadd.f32 0.0, %v1489
      %v1491 = vpop.f32.mrb[0].mxu0
      %v1492 = vadd.f32 0.0, %v1491
      %1493 = vdwg.mxu0
      %v1494 = vadd.f32 %v1403, %v1490
      %v1495 = vadd.f32 %v1405, %v1492
      %1496 = vrot.lane.b32.xlu0 %v1230, 1
      %v1497 = vpop.permute.xlu0 %1496
      %1499 = vrot.lane.b32.xlu0 %v1229, 1
      %v1500 = vpop.permute.xlu0 %1499
      %v1501 = vsel %vm583, %v1500, %v1497
      %v1504 = vsel %vm583, %v1497, %v1500
      %v1505 = vmul.f32 %v1504, %v594
      %v1506 = vmul.f32 %v1501, %v598
      %s1507 = scalar_lea.vmem %s4, 12
      %v1508 = vld [vmem:[%s1507] sm:$0xf]
      %v1510 = vsel %vm1258, %v1508, 0
      %1512 = vmatprep.subr.mxu0 %v1506
      %1513 = vmatpush1.msra.mxu0 %v1505
      %1514 = vmatprep.subr.mxu0 0.0
      %1515 = vmatpush1.msra.mxu0 0.0
      %1516 = vmatprep.subr.mxu0 0.0
      %1517 = vmatpush1.msra.mxu0 0.0
      %1518 = vmatprep.subr.mxu0 0.0
      %1519 = vmatpush1.msra.mxu0 0.0
      %1520 = vmatprep.subr.mxu0 0.0
      %1521 = vmatpush1.msra.mxu0 0.0
      %1522 = vmatprep.subr.mxu0 0.0
      %1523 = vmatpush1.msra.mxu0 0.0
      %1524 = vmatprep.subr.mxu0 0.0
      %1525 = vmatpush1.msra.mxu0 0.0
      %1526 = vmatprep.subr.mxu0 0.0
      %1527 = vmatpush1.msra.mxu0 0.0
      %1528 = vmatprep.subr.mxu0 0.0
      %1529 = vmatpush1.msra.mxu0 0.0
      %1530 = vmatprep.subr.mxu0 0.0
      %1531 = vmatpush1.msra.mxu0 0.0
      %1532 = vmatprep.subr.mxu0 0.0
      %1533 = vmatpush1.msra.mxu0 0.0
      %1534 = vmatprep.subr.mxu0 0.0
      %1535 = vmatpush1.msra.mxu0 0.0
      %1536 = vmatprep.subr.mxu0 0.0
      %1537 = vmatpush1.msra.mxu0 0.0
      %1538 = vmatprep.subr.mxu0 0.0
      %1539 = vmatpush1.msra.mxu0 0.0
      %1540 = vmatprep.subr.mxu0 0.0
      %1541 = vmatpush1.msra.mxu0 0.0
      %1542 = vmatprep.subr.mxu0 0.0
      %1543 = vmatpush1.msra.mxu0 0.0
      %1544 = vmatprep.subr.mxu0 0.0
      %1545 = vmatpush1.msra.mxu0 0.0
      %1546 = vmatprep.subr.mxu0 0.0
      %1547 = vmatpush1.msra.mxu0 0.0
      %1548 = vmatprep.subr.mxu0 0.0
      %1549 = vmatpush1.msra.mxu0 0.0
      %1550 = vmatprep.subr.mxu0 0.0
      %1551 = vmatpush1.msra.mxu0 0.0
      %1552 = vmatprep.subr.mxu0 0.0
      %1553 = vmatpush1.msra.mxu0 0.0
      %1554 = vmatprep.subr.mxu0 0.0
      %1555 = vmatpush1.msra.mxu0 0.0
      %1556 = vmatprep.subr.mxu0 0.0
      %1557 = vmatpush1.msra.mxu0 0.0
      %1558 = vmatprep.subr.mxu0 0.0
      %1559 = vmatpush1.msra.mxu0 0.0
      %1560 = vmatprep.subr.mxu0 0.0
      %1561 = vmatpush1.msra.mxu0 0.0
      %1562 = vmatprep.subr.mxu0 0.0
      %1563 = vmatpush1.msra.mxu0 0.0
      %1564 = vmatprep.subr.mxu0 0.0
      %1565 = vmatpush1.msra.mxu0 0.0
      %1566 = vmatprep.subr.mxu0 0.0
      %1567 = vmatpush1.msra.mxu0 0.0
      %1568 = vmatprep.subr.mxu0 0.0
      %1569 = vmatpush1.msra.mxu0 0.0
      %1570 = vmatprep.subr.mxu0 0.0
      %1571 = vmatpush1.msra.mxu0 0.0
      %1572 = vmatprep.subr.mxu0 0.0
      %1573 = vmatpush1.msra.mxu0 0.0
      %1574 = vmatprep.subr.mxu0 0.0
      %1575 = vmatpush1.msra.mxu0 0.0
      %1576 = vmatprep.mubr.f32.mxu0 0.0
      %1577 = vmatmul.mubr.f32.gmra.mrb[0].mxu0 %v1510
      %v1578 = vpop.f32.mrb[0].mxu0
      %v1579 = vadd.f32 0.0, %v1578
      %v1580 = vpop.f32.mrb[0].mxu0
      %v1581 = vadd.f32 0.0, %v1580
      %1582 = vdwg.mxu0
      %v1583 = vadd.f32 %v1494, %v1579
      %v1584 = vadd.f32 %v1495, %v1581
      %v1587 = vmul.f32 %v1229, %v693
      %v1588 = vmul.f32 %v1230, %v697
      %s1589 = scalar_lea.vmem %s4, 16
      %v1590 = vld [vmem:[%s1589] sm:$0xf]
      %v1592 = vsel %vm1258, %v1590, 0
      %1594 = vmatprep.subr.mxu0 %v1588
      %1595 = vmatpush1.msra.mxu0 %v1587
      %1596 = vmatprep.subr.mxu0 0.0
      %1597 = vmatpush1.msra.mxu0 0.0
      %1598 = vmatprep.subr.mxu0 0.0
      %1599 = vmatpush1.msra.mxu0 0.0
      %1600 = vmatprep.subr.mxu0 0.0
      %1601 = vmatpush1.msra.mxu0 0.0
      %1602 = vmatprep.subr.mxu0 0.0
      %1603 = vmatpush1.msra.mxu0 0.0
      %1604 = vmatprep.subr.mxu0 0.0
      %1605 = vmatpush1.msra.mxu0 0.0
      %1606 = vmatprep.subr.mxu0 0.0
      %1607 = vmatpush1.msra.mxu0 0.0
      %1608 = vmatprep.subr.mxu0 0.0
      %1609 = vmatpush1.msra.mxu0 0.0
      %1610 = vmatprep.subr.mxu0 0.0
      %1611 = vmatpush1.msra.mxu0 0.0
      %1612 = vmatprep.subr.mxu0 0.0
      %1613 = vmatpush1.msra.mxu0 0.0
      %1614 = vmatprep.subr.mxu0 0.0
      %1615 = vmatpush1.msra.mxu0 0.0
      %1616 = vmatprep.subr.mxu0 0.0
      %1617 = vmatpush1.msra.mxu0 0.0
      %1618 = vmatprep.subr.mxu0 0.0
      %1619 = vmatpush1.msra.mxu0 0.0
      %1620 = vmatprep.subr.mxu0 0.0
      %1621 = vmatpush1.msra.mxu0 0.0
      %1622 = vmatprep.subr.mxu0 0.0
      %1623 = vmatpush1.msra.mxu0 0.0
      %1624 = vmatprep.subr.mxu0 0.0
      %1625 = vmatpush1.msra.mxu0 0.0
      %1626 = vmatprep.subr.mxu0 0.0
      %1627 = vmatpush1.msra.mxu0 0.0
      %1628 = vmatprep.subr.mxu0 0.0
      %1629 = vmatpush1.msra.mxu0 0.0
      %1630 = vmatprep.subr.mxu0 0.0
      %1631 = vmatpush1.msra.mxu0 0.0
      %1632 = vmatprep.subr.mxu0 0.0
      %1633 = vmatpush1.msra.mxu0 0.0
      %1634 = vmatprep.subr.mxu0 0.0
      %1635 = vmatpush1.msra.mxu0 0.0
      %1636 = vmatprep.subr.mxu0 0.0
      %1637 = vmatpush1.msra.mxu0 0.0
      %1638 = vmatprep.subr.mxu0 0.0
      %1639 = vmatpush1.msra.mxu0 0.0
      %1640 = vmatprep.subr.mxu0 0.0
      %1641 = vmatpush1.msra.mxu0 0.0
      %1642 = vmatprep.subr.mxu0 0.0
      %1643 = vmatpush1.msra.mxu0 0.0
      %1644 = vmatprep.subr.mxu0 0.0
      %1645 = vmatpush1.msra.mxu0 0.0
      %1646 = vmatprep.subr.mxu0 0.0
      %1647 = vmatpush1.msra.mxu0 0.0
      %1648 = vmatprep.subr.mxu0 0.0
      %1649 = vmatpush1.msra.mxu0 0.0
      %1650 = vmatprep.subr.mxu0 0.0
      %1651 = vmatpush1.msra.mxu0 0.0
      %1652 = vmatprep.subr.mxu0 0.0
      %1653 = vmatpush1.msra.mxu0 0.0
      %1654 = vmatprep.subr.mxu0 0.0
      %1655 = vmatpush1.msra.mxu0 0.0
      %1656 = vmatprep.subr.mxu0 0.0
      %1657 = vmatpush1.msra.mxu0 0.0
      %1658 = vmatprep.mubr.f32.mxu0 0.0
      %1659 = vmatmul.mubr.f32.gmra.mrb[0].mxu0 %v1592
      %v1660 = vpop.f32.mrb[0].mxu0
      %v1661 = vadd.f32 0.0, %v1660
      %v1662 = vpop.f32.mrb[0].mxu0
      %v1663 = vadd.f32 0.0, %v1662
      %1664 = vdwg.mxu0
      %v1665 = vadd.f32 %v1583, %v1661
      %v1666 = vadd.f32 %v1584, %v1663
      %1667 = vrot.lane.b32.xlu0 %v1229, 127
      %v1668 = vpop.permute.xlu0 %1667
      %1669 = vrot.lane.b32.xlu0 %v1230, 127
      %v1670 = vpop.permute.xlu0 %1669
      %v1671 = vsel %vm789, %v1668, %v1670
      %v1675 = vsel %vm789, %v1670, %v1668
      %v1676 = vmul.f32 %v1671, %v801
      %v1677 = vmul.f32 %v1675, %v805
      %s1678 = scalar_lea.vmem %s4, 20
      %v1679 = vld [vmem:[%s1678] sm:$0xf]
      %v1681 = vsel %vm1258, %v1679, 0
      %1683 = vmatprep.subr.mxu0 %v1677
      %1684 = vmatpush1.msra.mxu0 %v1676
      %1685 = vmatprep.subr.mxu0 0.0
      %1686 = vmatpush1.msra.mxu0 0.0
      %1687 = vmatprep.subr.mxu0 0.0
      %1688 = vmatpush1.msra.mxu0 0.0
      %1689 = vmatprep.subr.mxu0 0.0
      %1690 = vmatpush1.msra.mxu0 0.0
      %1691 = vmatprep.subr.mxu0 0.0
      %1692 = vmatpush1.msra.mxu0 0.0
      %1693 = vmatprep.subr.mxu0 0.0
      %1694 = vmatpush1.msra.mxu0 0.0
      %1695 = vmatprep.subr.mxu0 0.0
      %1696 = vmatpush1.msra.mxu0 0.0
      %1697 = vmatprep.subr.mxu0 0.0
      %1698 = vmatpush1.msra.mxu0 0.0
      %1699 = vmatprep.subr.mxu0 0.0
      %1700 = vmatpush1.msra.mxu0 0.0
      %1701 = vmatprep.subr.mxu0 0.0
      %1702 = vmatpush1.msra.mxu0 0.0
      %1703 = vmatprep.subr.mxu0 0.0
      %1704 = vmatpush1.msra.mxu0 0.0
      %1705 = vmatprep.subr.mxu0 0.0
      %1706 = vmatpush1.msra.mxu0 0.0
      %1707 = vmatprep.subr.mxu0 0.0
      %1708 = vmatpush1.msra.mxu0 0.0
      %1709 = vmatprep.subr.mxu0 0.0
      %1710 = vmatpush1.msra.mxu0 0.0
      %1711 = vmatprep.subr.mxu0 0.0
      %1712 = vmatpush1.msra.mxu0 0.0
      %1713 = vmatprep.subr.mxu0 0.0
      %1714 = vmatpush1.msra.mxu0 0.0
      %1715 = vmatprep.subr.mxu0 0.0
      %1716 = vmatpush1.msra.mxu0 0.0
      %1717 = vmatprep.subr.mxu0 0.0
      %1718 = vmatpush1.msra.mxu0 0.0
      %1719 = vmatprep.subr.mxu0 0.0
      %1720 = vmatpush1.msra.mxu0 0.0
      %1721 = vmatprep.subr.mxu0 0.0
      %1722 = vmatpush1.msra.mxu0 0.0
      %1723 = vmatprep.subr.mxu0 0.0
      %1724 = vmatpush1.msra.mxu0 0.0
      %1725 = vmatprep.subr.mxu0 0.0
      %1726 = vmatpush1.msra.mxu0 0.0
      %1727 = vmatprep.subr.mxu0 0.0
      %1728 = vmatpush1.msra.mxu0 0.0
      %1729 = vmatprep.subr.mxu0 0.0
      %1730 = vmatpush1.msra.mxu0 0.0
      %1731 = vmatprep.subr.mxu0 0.0
      %1732 = vmatpush1.msra.mxu0 0.0
      %1733 = vmatprep.subr.mxu0 0.0
      %1734 = vmatpush1.msra.mxu0 0.0
      %1735 = vmatprep.subr.mxu0 0.0
      %1736 = vmatpush1.msra.mxu0 0.0
      %1737 = vmatprep.subr.mxu0 0.0
      %1738 = vmatpush1.msra.mxu0 0.0
      %1739 = vmatprep.subr.mxu0 0.0
      %1740 = vmatpush1.msra.mxu0 0.0
      %1741 = vmatprep.subr.mxu0 0.0
      %1742 = vmatpush1.msra.mxu0 0.0
      %1743 = vmatprep.subr.mxu0 0.0
      %1744 = vmatpush1.msra.mxu0 0.0
      %1745 = vmatprep.subr.mxu0 0.0
      %1746 = vmatpush1.msra.mxu0 0.0
      %1747 = vmatprep.mubr.f32.mxu0 0.0
      %1748 = vmatmul.mubr.f32.gmra.mrb[0].mxu0 %v1681
      %v1749 = vpop.f32.mrb[0].mxu0
      %v1750 = vadd.f32 0.0, %v1749
      %v1751 = vpop.f32.mrb[0].mxu0
      %v1752 = vadd.f32 0.0, %v1751
      %1753 = vdwg.mxu0
      %v1754 = vadd.f32 %v1665, %v1750
      %v1755 = vadd.f32 %v1666, %v1752
      %1756 = vrot.lane.b32.xlu0 %v1229, 113
      %v1757 = vpop.permute.xlu0 %1756
      %1758 = vrot.lane.b32.xlu0 %v1230, 113
      %v1759 = vpop.permute.xlu0 %1758
      %v1760 = vsel %vm898, %v1757, %v1759
      %v1764 = vsel %vm898, %v1759, %v1757
      %v1765 = vmul.f32 %v1760, %v910
      %v1766 = vmul.f32 %v1764, %v914
      %s1767 = scalar_lea.vmem %s4, 24
      %v1768 = vld [vmem:[%s1767] sm:$0xf]
      %v1770 = vsel %vm1258, %v1768, 0
      %1772 = vmatprep.subr.mxu0 %v1766
      %1773 = vmatpush1.msra.mxu0 %v1765
      %1774 = vmatprep.subr.mxu0 0.0
      %1775 = vmatpush1.msra.mxu0 0.0
      %1776 = vmatprep.subr.mxu0 0.0
      %1777 = vmatpush1.msra.mxu0 0.0
      %1778 = vmatprep.subr.mxu0 0.0
      %1779 = vmatpush1.msra.mxu0 0.0
      %1780 = vmatprep.subr.mxu0 0.0
      %1781 = vmatpush1.msra.mxu0 0.0
      %1782 = vmatprep.subr.mxu0 0.0
      %1783 = vmatpush1.msra.mxu0 0.0
      %1784 = vmatprep.subr.mxu0 0.0
      %1785 = vmatpush1.msra.mxu0 0.0
      %1786 = vmatprep.subr.mxu0 0.0
      %1787 = vmatpush1.msra.mxu0 0.0
      %1788 = vmatprep.subr.mxu0 0.0
      %1789 = vmatpush1.msra.mxu0 0.0
      %1790 = vmatprep.subr.mxu0 0.0
      %1791 = vmatpush1.msra.mxu0 0.0
      %1792 = vmatprep.subr.mxu0 0.0
      %1793 = vmatpush1.msra.mxu0 0.0
      %1794 = vmatprep.subr.mxu0 0.0
      %1795 = vmatpush1.msra.mxu0 0.0
      %1796 = vmatprep.subr.mxu0 0.0
      %1797 = vmatpush1.msra.mxu0 0.0
      %1798 = vmatprep.subr.mxu0 0.0
      %1799 = vmatpush1.msra.mxu0 0.0
      %1800 = vmatprep.subr.mxu0 0.0
      %1801 = vmatpush1.msra.mxu0 0.0
      %1802 = vmatprep.subr.mxu0 0.0
      %1803 = vmatpush1.msra.mxu0 0.0
      %1804 = vmatprep.subr.mxu0 0.0
      %1805 = vmatpush1.msra.mxu0 0.0
      %1806 = vmatprep.subr.mxu0 0.0
      %1807 = vmatpush1.msra.mxu0 0.0
      %1808 = vmatprep.subr.mxu0 0.0
      %1809 = vmatpush1.msra.mxu0 0.0
      %1810 = vmatprep.subr.mxu0 0.0
      %1811 = vmatpush1.msra.mxu0 0.0
      %1812 = vmatprep.subr.mxu0 0.0
      %1813 = vmatpush1.msra.mxu0 0.0
      %1814 = vmatprep.subr.mxu0 0.0
      %1815 = vmatpush1.msra.mxu0 0.0
      %1816 = vmatprep.subr.mxu0 0.0
      %1817 = vmatpush1.msra.mxu0 0.0
      %1818 = vmatprep.subr.mxu0 0.0
      %1819 = vmatpush1.msra.mxu0 0.0
      %1820 = vmatprep.subr.mxu0 0.0
      %1821 = vmatpush1.msra.mxu0 0.0
      %1822 = vmatprep.subr.mxu0 0.0
      %1823 = vmatpush1.msra.mxu0 0.0
      %1824 = vmatprep.subr.mxu0 0.0
      %1825 = vmatpush1.msra.mxu0 0.0
      %1826 = vmatprep.subr.mxu0 0.0
      %1827 = vmatpush1.msra.mxu0 0.0
      %1828 = vmatprep.subr.mxu0 0.0
      %1829 = vmatpush1.msra.mxu0 0.0
      %1830 = vmatprep.subr.mxu0 0.0
      %1831 = vmatpush1.msra.mxu0 0.0
      %1832 = vmatprep.subr.mxu0 0.0
      %1833 = vmatpush1.msra.mxu0 0.0
      %1834 = vmatprep.subr.mxu0 0.0
      %1835 = vmatpush1.msra.mxu0 0.0
      %1836 = vmatprep.mubr.f32.mxu0 0.0
      %1837 = vmatmul.mubr.f32.gmra.mrb[0].mxu0 %v1770
      %v1838 = vpop.f32.mrb[0].mxu0
      %v1839 = vadd.f32 0.0, %v1838
      %v1840 = vpop.f32.mrb[0].mxu0
      %v1841 = vadd.f32 0.0, %v1840
      %1842 = vdwg.mxu0
      %v1843 = vadd.f32 %v1754, %v1839
      %v1844 = vadd.f32 %v1755, %v1841
      %1845 = vrot.lane.b32.xlu0 %v1229, 112
      %v1846 = vpop.permute.xlu0 %1845
      %1847 = vrot.lane.b32.xlu0 %v1230, 112
      %v1848 = vpop.permute.xlu0 %1847
      %v1849 = vsel %vm1007, %v1846, %v1848
      %v1853 = vsel %vm1007, %v1848, %v1846
      %v1854 = vmul.f32 %v1849, %v1019
      %v1855 = vmul.f32 %v1853, %v1023
      %s1856 = scalar_lea.vmem %s4, 28
      %v1857 = vld [vmem:[%s1856] sm:$0xf]
      %v1859 = vsel %vm1258, %v1857, 0
      %1861 = vmatprep.subr.mxu0 %v1855
      %1862 = vmatpush1.msra.mxu0 %v1854
      %1863 = vmatprep.subr.mxu0 0.0
      %1864 = vmatpush1.msra.mxu0 0.0
      %1865 = vmatprep.subr.mxu0 0.0
      %1866 = vmatpush1.msra.mxu0 0.0
      %1867 = vmatprep.subr.mxu0 0.0
      %1868 = vmatpush1.msra.mxu0 0.0
      %1869 = vmatprep.subr.mxu0 0.0
      %1870 = vmatpush1.msra.mxu0 0.0
      %1871 = vmatprep.subr.mxu0 0.0
      %1872 = vmatpush1.msra.mxu0 0.0
      %1873 = vmatprep.subr.mxu0 0.0
      %1874 = vmatpush1.msra.mxu0 0.0
      %1875 = vmatprep.subr.mxu0 0.0
      %1876 = vmatpush1.msra.mxu0 0.0
      %1877 = vmatprep.subr.mxu0 0.0
      %1878 = vmatpush1.msra.mxu0 0.0
      %1879 = vmatprep.subr.mxu0 0.0
      %1880 = vmatpush1.msra.mxu0 0.0
      %1881 = vmatprep.subr.mxu0 0.0
      %1882 = vmatpush1.msra.mxu0 0.0
      %1883 = vmatprep.subr.mxu0 0.0
      %1884 = vmatpush1.msra.mxu0 0.0
      %1885 = vmatprep.subr.mxu0 0.0
      %1886 = vmatpush1.msra.mxu0 0.0
      %1887 = vmatprep.subr.mxu0 0.0
      %1888 = vmatpush1.msra.mxu0 0.0
      %1889 = vmatprep.subr.mxu0 0.0
      %1890 = vmatpush1.msra.mxu0 0.0
      %1891 = vmatprep.subr.mxu0 0.0
      %1892 = vmatpush1.msra.mxu0 0.0
      %1893 = vmatprep.subr.mxu0 0.0
      %1894 = vmatpush1.msra.mxu0 0.0
      %1895 = vmatprep.subr.mxu0 0.0
      %1896 = vmatpush1.msra.mxu0 0.0
      %1897 = vmatprep.subr.mxu0 0.0
      %1898 = vmatpush1.msra.mxu0 0.0
      %1899 = vmatprep.subr.mxu0 0.0
      %1900 = vmatpush1.msra.mxu0 0.0
      %1901 = vmatprep.subr.mxu0 0.0
      %1902 = vmatpush1.msra.mxu0 0.0
      %1903 = vmatprep.subr.mxu0 0.0
      %1904 = vmatpush1.msra.mxu0 0.0
      %1905 = vmatprep.subr.mxu0 0.0
      %1906 = vmatpush1.msra.mxu0 0.0
      %1907 = vmatprep.subr.mxu0 0.0
      %1908 = vmatpush1.msra.mxu0 0.0
      %1909 = vmatprep.subr.mxu0 0.0
      %1910 = vmatpush1.msra.mxu0 0.0
      %1911 = vmatprep.subr.mxu0 0.0
      %1912 = vmatpush1.msra.mxu0 0.0
      %1913 = vmatprep.subr.mxu0 0.0
      %1914 = vmatpush1.msra.mxu0 0.0
      %1915 = vmatprep.subr.mxu0 0.0
      %1916 = vmatpush1.msra.mxu0 0.0
      %1917 = vmatprep.subr.mxu0 0.0
      %1918 = vmatpush1.msra.mxu0 0.0
      %1919 = vmatprep.subr.mxu0 0.0
      %1920 = vmatpush1.msra.mxu0 0.0
      %1921 = vmatprep.subr.mxu0 0.0
      %1922 = vmatpush1.msra.mxu0 0.0
      %1923 = vmatprep.subr.mxu0 0.0
      %1924 = vmatpush1.msra.mxu0 0.0
      %1925 = vmatprep.mubr.f32.mxu0 0.0
      %1926 = vmatmul.mubr.f32.gmra.mrb[0].mxu0 %v1859
      %v1927 = vpop.f32.mrb[0].mxu0
      %v1928 = vadd.f32 0.0, %v1927
      %v1929 = vpop.f32.mrb[0].mxu0
      %v1930 = vadd.f32 0.0, %v1929
      %1931 = vdwg.mxu0
      %v1932 = vadd.f32 %v1843, %v1928
      %v1933 = vadd.f32 %v1844, %v1930
      %1934 = vrot.lane.b32.xlu0 %v1229, 111
      %v1935 = vpop.permute.xlu0 %1934
      %1936 = vrot.lane.b32.xlu0 %v1230, 111
      %v1937 = vpop.permute.xlu0 %1936
      %v1938 = vsel %vm1116, %v1935, %v1937
      %v1942 = vsel %vm1116, %v1937, %v1935
      %v1943 = vmul.f32 %v1938, %v1128
      %v1944 = vmul.f32 %v1942, %v1132
      %s1945 = scalar_lea.vmem %s4, 32
      %v1946 = vld [vmem:[%s1945] sm:$0xf]
      %v1948 = vsel %vm1258, %v1946, 0
      %1950 = vmatprep.subr.mxu0 %v1944
      %1951 = vmatpush1.msra.mxu0 %v1943
      %1952 = vmatprep.subr.mxu0 0.0
      %1953 = vmatpush1.msra.mxu0 0.0
      %1954 = vmatprep.subr.mxu0 0.0
      %1955 = vmatpush1.msra.mxu0 0.0
      %1956 = vmatprep.subr.mxu0 0.0
      %1957 = vmatpush1.msra.mxu0 0.0
      %1958 = vmatprep.subr.mxu0 0.0
      %1959 = vmatpush1.msra.mxu0 0.0
      %1960 = vmatprep.subr.mxu0 0.0
      %1961 = vmatpush1.msra.mxu0 0.0
      %1962 = vmatprep.subr.mxu0 0.0
      %1963 = vmatpush1.msra.mxu0 0.0
      %1964 = vmatprep.subr.mxu0 0.0
      %1965 = vmatpush1.msra.mxu0 0.0
      %1966 = vmatprep.subr.mxu0 0.0
      %1967 = vmatpush1.msra.mxu0 0.0
      %1968 = vmatprep.subr.mxu0 0.0
      %1969 = vmatpush1.msra.mxu0 0.0
      %1970 = vmatprep.subr.mxu0 0.0
      %1971 = vmatpush1.msra.mxu0 0.0
      %1972 = vmatprep.subr.mxu0 0.0
      %1973 = vmatpush1.msra.mxu0 0.0
      %1974 = vmatprep.subr.mxu0 0.0
      %1975 = vmatpush1.msra.mxu0 0.0
      %1976 = vmatprep.subr.mxu0 0.0
      %1977 = vmatpush1.msra.mxu0 0.0
      %1978 = vmatprep.subr.mxu0 0.0
      %1979 = vmatpush1.msra.mxu0 0.0
      %1980 = vmatprep.subr.mxu0 0.0
      %1981 = vmatpush1.msra.mxu0 0.0
      %1982 = vmatprep.subr.mxu0 0.0
      %1983 = vmatpush1.msra.mxu0 0.0
      %1984 = vmatprep.subr.mxu0 0.0
      %1985 = vmatpush1.msra.mxu0 0.0
      %1986 = vmatprep.subr.mxu0 0.0
      %1987 = vmatpush1.msra.mxu0 0.0
      %1988 = vmatprep.subr.mxu0 0.0
      %1989 = vmatpush1.msra.mxu0 0.0
      %1990 = vmatprep.subr.mxu0 0.0
      %1991 = vmatpush1.msra.mxu0 0.0
      %1992 = vmatprep.subr.mxu0 0.0
      %1993 = vmatpush1.msra.mxu0 0.0
      %1994 = vmatprep.subr.mxu0 0.0
      %1995 = vmatpush1.msra.mxu0 0.0
      %1996 = vmatprep.subr.mxu0 0.0
      %1997 = vmatpush1.msra.mxu0 0.0
      %1998 = vmatprep.subr.mxu0 0.0
      %1999 = vmatpush1.msra.mxu0 0.0
      %2000 = vmatprep.subr.mxu0 0.0
      %2001 = vmatpush1.msra.mxu0 0.0
      %2002 = vmatprep.subr.mxu0 0.0
      %2003 = vmatpush1.msra.mxu0 0.0
      %2004 = vmatprep.subr.mxu0 0.0
      %2005 = vmatpush1.msra.mxu0 0.0
      %2006 = vmatprep.subr.mxu0 0.0
      %2007 = vmatpush1.msra.mxu0 0.0
      %2008 = vmatprep.subr.mxu0 0.0
      %2009 = vmatpush1.msra.mxu0 0.0
      %2010 = vmatprep.subr.mxu0 0.0
      %2011 = vmatpush1.msra.mxu0 0.0
      %2012 = vmatprep.subr.mxu0 0.0
      %2013 = vmatpush1.msra.mxu0 0.0
      %2014 = vmatprep.mubr.f32.mxu0 0.0
      %2015 = vmatmul.mubr.f32.gmra.mrb[0].mxu0 %v1948
      %v2016 = vpop.f32.mrb[0].mxu0
      %v2017 = vadd.f32 0.0, %v2016
      %v2018 = vpop.f32.mrb[0].mxu0
      %v2019 = vadd.f32 0.0, %v2018
      %2020 = vdwg.mxu0
      %v2021 = vadd.f32 %v1932, %v2017
      %v2022 = vadd.f32 %v1933, %v2019
      %v2023 = vld [vmem:[%s5] sm:$0xf]
      %2025 = vset.pattern.permute.xlu0 0
      %2026 = vperm.xlu0 %2025, %v2023
      %v2027 = vpop.permute.xlu0 %2026
      %v2029 = vadd.f32 %v2021, %v2027
      %v2030 = vadd.f32 %v2022, %v2027
      %v2031 = vmax.f32 %v2029, 0.0
      %v2032 = vmax.f32 %v2030, 0.0
      %v2035 = vcombine.low %v2031, %v2032
      %2037 = vst [vmem:[%s251] sm:$0xff] %v2035
      %p2038 = scmp.lt.s32.totalorder %s17, 1
      %s2039 = scalar_select %p2038, %s17, 1
      %s2040 = smul.addr %s2039, 2
      %s2041 = smul.addr %s2040, 4
      %s2042 = scalar_lea.vmem %s6, %s2041
      // Predicated region
      $region45: #{_lambda_.1} parent=43 // pred_check
        %p2043 = pneg %p166
      $region46: #{_lambda_.1} parent=43 // pred_check_branch
        %2045 = sbr.rel (%p2043) target = $region48
      $region47: #{_lambda_.1} parent=43 // pred_region
        _
      $region48: #{_lambda_.1} parent=43 // pred_fallthru
        _
    $region44: #{_lambda_.1} parent=5 // pred_fallthru
      _
    %p2046 = scmp.le.s32.totalorder 2, %s12
    // Predicated region
    $region49: #{_lambda_.1} parent=5 // pred_check
      %p2047 = pneg %p2046
    $region50: #{_lambda_.1} parent=5 // pred_check_branch
      %2049 = sbr.rel (%p2047) target = $region52
    $region51: #{_lambda_.1} parent=5 // pred_region
      %s2050 = ssub.s32 %s12, 2
      // Predicated region
      $region53: #{_lambda_.1} parent=51 // pred_check
        %p2051 = pneg %p172
      $region54: #{_lambda_.1} parent=51 // pred_check_branch
        %2053 = sbr.rel (%p2051) target = $region56
      $region55: #{_lambda_.1} parent=51 // pred_region
        %p2054 = scmp.lt.s32.totalorder %s18, 1
        %s2055 = scalar_select %p2054, %s18, 1
        %s2056 = smul.addr %s2055, 2
        %s2057 = smul.addr %s2056, 4
        %s2058 = scalar_lea.vmem %s6, %s2057
      $region56: #{_lambda_.1} parent=51 // pred_fallthru
        _
    $region52: #{_lambda_.1} parent=5 // pred_fallthru
      _
  $region6: #{_lambda_.1} parent=0 // loop_footer
    %s16 = sadd.s32 1, %s12
  $region7: #{_lambda_.1} parent=0 // loop_footer_branch
    %11 = sbr.rel target = $region3
  $region8: #{_lambda_.1} parent=0 // loop_exit
    _

</llo_original>
